<compile_context>
chip_gen: v6e
topology: v6e:2x2x1
jax: 0.10.0
libtpu: 0.0.40
codegen_flags: <defaults>
</compile_context>

<pallas_src>
import jax
import jax.numpy as jnp
from jax.experimental import pallas as pl
from jax.experimental.pallas import tpu as pltpu


def net_decoder_kernel(x_ref, w1_ref, b1_ref, w2_ref, b2_ref, y_ref):
    # x:  (TB, LATENT)      bf16
    # w1: (LATENT, HIDDEN)  bf16   b1: (1, HIDDEN) f32
    # w2: (HIDDEN, OUT)     bf16   b2: (1, OUT)    f32
    # y:  (TB, OUT)         bf16
    x = x_ref[...]

    # dec: Linear -> ReLU -> Linear (bf16 MXU matmuls, f32 accumulation)
    h = jnp.dot(x, w1_ref[...], preferred_element_type=jnp.float32) + b1_ref[...]
    h = jnp.maximum(h, 0.0)

    logits = (
        jnp.dot(h.astype(jnp.bfloat16), w2_ref[...],
                preferred_element_type=jnp.float32)
        + b2_ref[...]
    )

    # Net.forward: y = sigmoid(logits) * 255  ==  127.5 * tanh(logits/2) + 127.5
    # (single EUP tanh + 2 VPU ops, no divide). f32 math, bf16 store.
    y = 127.5 * jnp.tanh(0.5 * logits) + 127.5
    y_ref[...] = y.astype(y_ref.dtype)


def _choose_tb(b):
    """Largest power-of-two batch tile <= 1024 that still gives >= 2 grid steps
    (so a v7x megacore can shard the batch axis), floored at 8 rows."""
    tb = 1024
    while tb > 8 and pl.cdiv(b, tb) < 2:
        tb //= 2
    return max(tb, 8)


def net_forward(x, w1, b1, w2, b2, *, tb=None):
    """y = sigmoid((relu(x @ w1 + b1)) @ w2 + b2) * 255, in one Pallas call."""
    B, latent = x.shape
    hidden, out = w2.shape

    if tb is None:
        tb = _choose_tb(B)

    # Pad the batch to a multiple of the batch tile. No column padding: the
    # output block's last dim equals the full array dim (784), which is legal
    # and avoids writing dead columns + a post-kernel slice copy.
    b_pad = pl.cdiv(B, tb) * tb

    x_p = jnp.pad(x, ((0, b_pad - B), (0, 0))).astype(jnp.bfloat16)
    w1_c = w1.astype(jnp.bfloat16)
    b1_c = b1.astype(jnp.float32)
    w2_c = w2.astype(jnp.bfloat16)
    b2_c = b2.astype(jnp.float32)

    grid = (b_pad // tb,)

    # VMEM budget: double-buffered x/y tiles, (worst-case double-buffered)
    # resident weights, plus f32 intermediates; 2x headroom, capped at 32 MiB
    # so it stays safe on v7x's smaller per-core VMEM.
    tile_bytes = (
        2 * tb * latent * 2                       # x tile (bf16, 2 buffers)
        + 2 * tb * out * 2                        # y tile (bf16, 2 buffers)
        + 2 * (latent * hidden * 2 + hidden * 4   # w1 + b1
               + hidden * out * 2 + out * 4)      # w2 + b2
        + tb * hidden * 4 + tb * out * 4          # f32 intermediates (h, logits)
    )
    vmem_limit = min(32 << 20, max(16 << 20, 2 * tile_bytes))

    y_pad = pl.pallas_call(
        net_decoder_kernel,
        out_shape=jax.ShapeDtypeStruct((b_pad, out), jnp.bfloat16),
        grid=grid,
        in_specs=[
            pl.BlockSpec((tb, latent), lambda i: (i, 0)),      # x: streamed
            pl.BlockSpec((latent, hidden), lambda i: (0, 0)),  # w1: resident
            pl.BlockSpec((1, hidden), lambda i: (0, 0)),       # b1: resident
            pl.BlockSpec((hidden, out), lambda i: (0, 0)),     # w2: resident
            pl.BlockSpec((1, out), lambda i: (0, 0)),          # b2: resident
        ],
        out_specs=pl.BlockSpec((tb, out), lambda i: (i, 0)),
        compiler_params=pltpu.CompilerParams(
            dimension_semantics=("parallel",),  # 2 TCs on v7x; no-op on v5e/v6e
            vmem_limit_bytes=vmem_limit,
        ),
    )(x_p, w1_c, b1_c, w2_c, b2_c)

    # Strip batch padding (no-op copy when B % tb == 0). No column slice needed.
    return y_pad[:B]


if __name__ == "__main__":
    # MNIST-decoder-like shapes; B spans 2 batch tiles to exercise the grid
    # (and so both v7x TensorCores would get work).
    B, LATENT, HIDDEN, OUT = 512, 32, 128, 784  # OUT = 28*28

    key = jax.random.PRNGKey(0)
    kx, k1, k2, k3, k4 = jax.random.split(key, 5)

    # Deterministic synthetic parameters (PyTorch Linear-ish scaling).
    x = jax.random.normal(kx, (B, LATENT), dtype=jnp.float32)
    w1 = jax.random.normal(k1, (LATENT, HIDDEN), dtype=jnp.float32) * (1.0 / LATENT ** 0.5)
    b1 = jax.random.normal(k2, (1, HIDDEN), dtype=jnp.float32) * 0.01
    w2 = jax.random.normal(k3, (HIDDEN, OUT), dtype=jnp.float32) * (1.0 / HIDDEN ** 0.5)
    b2 = jax.random.normal(k4, (1, OUT), dtype=jnp.float32) * 0.01

    y = net_forward(x, w1, b1, w2, b2)
    jax.block_until_ready(y)

    # Pure-JAX f32 reference of the module semantics. bf16 weights + bf16
    # output give ~1e-2 relative logit error and <=0.5 rounding near 255;
    # loose tolerance on the 0..255 output.
    h_ref = jnp.maximum(x @ w1 + b1, 0.0)
    y_ref = jax.nn.sigmoid(h_ref @ w2 + b2) * 255.0

    y_f32 = y.astype(jnp.float32)
    assert y.shape == (B, OUT)
    assert y.dtype == jnp.bfloat16
    assert jnp.allclose(y_f32, y_ref, atol=2.0, rtol=2e-2), (
        float(jnp.max(jnp.abs(y_f32 - y_ref)))
    )
    assert float(jnp.min(y_f32)) >= 0.0 and float(jnp.max(y_f32)) <= 255.0

    print("KERNEL_OK")
</pallas_src>

<mosaic_0001>
module attributes {stable_mosaic.version = 11 : i64} {
  func.func @net_decoder_kernel(%arg0: i32, %arg1: memref<256x32xbf16, #tpu.memory_space<vmem>>, %arg2: memref<32x128xbf16, #tpu.memory_space<vmem>>, %arg3: memref<1x128xf32, #tpu.memory_space<vmem>>, %arg4: memref<128x784xbf16, #tpu.memory_space<vmem>>, %arg5: memref<1x784xf32, #tpu.memory_space<vmem>>, %arg6: memref<256x784xbf16, #tpu.memory_space<vmem>>) attributes {dimension_semantics = [#tpu.dimension_semantics<parallel>], iteration_bounds = array<i64: 2>, scalar_prefetch = 0 : i64, scratch_operands = 0 : i64, tpu.core_type = #tpu.core_type<tc>, window_params = [{transform_indices = @transform_0, window_bounds = array<i64: 256, 32>}, {pipeline_mode = #tpu.pipeline_mode<synchronous>, transform_indices = @transform_1, window_bounds = array<i64: 32, 128>}, {pipeline_mode = #tpu.pipeline_mode<synchronous>, transform_indices = @transform_2, window_bounds = array<i64: 1, 128>}, {pipeline_mode = #tpu.pipeline_mode<synchronous>, transform_indices = @transform_3, window_bounds = array<i64: 128, 784>}, {pipeline_mode = #tpu.pipeline_mode<synchronous>, transform_indices = @transform_4, window_bounds = array<i64: 1, 784>}, {transform_indices = @transform_5, window_bounds = array<i64: 256, 784>}]} {
    %c0 = arith.constant 0 : index
    %c0_0 = arith.constant 0 : index
    %0 = vector.load %arg1[%c0, %c0_0] : memref<256x32xbf16, #tpu.memory_space<vmem>>, vector<256x32xbf16>
    %c0_1 = arith.constant 0 : index
    %c0_2 = arith.constant 0 : index
    %1 = vector.load %arg2[%c0_1, %c0_2] : memref<32x128xbf16, #tpu.memory_space<vmem>>, vector<32x128xbf16>
    %cst = arith.constant dense<0.000000e+00> : vector<256x128xf32>
    %2 = tpu.matmul %0, %1, %cst {dimension_numbers = #tpu.dot_dimension_numbers<[1], [0], [0], [1], [0, 0, 1, 1], [], []>} : vector<256x32xbf16>, vector<32x128xbf16>, vector<256x128xf32> -> vector<256x128xf32>
    %c0_3 = arith.constant 0 : index
    %c0_4 = arith.constant 0 : index
    %3 = vector.load %arg3[%c0_3, %c0_4] : memref<1x128xf32, #tpu.memory_space<vmem>>, vector<1x128xf32>
    %4 = vector.broadcast %3 : vector<1x128xf32> to vector<256x128xf32>
    %5 = arith.addf %2, %4 : vector<256x128xf32>
    %cst_5 = arith.constant 0.000000e+00 : f32
    %6 = vector.broadcast %cst_5 : f32 to vector<256x128xf32>
    %7 = arith.maximumf %5, %6 : vector<256x128xf32>
    %8 = arith.truncf %7 : vector<256x128xf32> to vector<256x128xbf16>
    %c0_6 = arith.constant 0 : index
    %c0_7 = arith.constant 0 : index
    %9 = vector.load %arg4[%c0_6, %c0_7] : memref<128x784xbf16, #tpu.memory_space<vmem>>, vector<128x784xbf16>
    %cst_8 = arith.constant dense<0.000000e+00> : vector<256x784xf32>
    %10 = tpu.matmul %8, %9, %cst_8 {dimension_numbers = #tpu.dot_dimension_numbers<[1], [0], [0], [1], [0, 0, 1, 1], [], []>} : vector<256x128xbf16>, vector<128x784xbf16>, vector<256x784xf32> -> vector<256x784xf32>
    %c0_9 = arith.constant 0 : index
    %c0_10 = arith.constant 0 : index
    %11 = vector.load %arg5[%c0_9, %c0_10] : memref<1x784xf32, #tpu.memory_space<vmem>>, vector<1x784xf32>
    %12 = vector.broadcast %11 : vector<1x784xf32> to vector<256x784xf32>
    %13 = arith.addf %10, %12 : vector<256x784xf32>
    %cst_11 = arith.constant 5.000000e-01 : f32
    %14 = vector.broadcast %cst_11 : f32 to vector<256x784xf32>
    %15 = arith.mulf %14, %13 : vector<256x784xf32>
    %16 = math.tanh %15 : vector<256x784xf32>
    %cst_12 = arith.constant 1.275000e+02 : f32
    %17 = vector.broadcast %cst_12 : f32 to vector<256x784xf32>
    %18 = arith.mulf %17, %16 : vector<256x784xf32>
    %cst_13 = arith.constant 1.275000e+02 : f32
    %19 = vector.broadcast %cst_13 : f32 to vector<256x784xf32>
    %20 = arith.addf %18, %19 : vector<256x784xf32>
    %21 = arith.truncf %20 : vector<256x784xf32> to vector<256x784xbf16>
    %c0_14 = arith.constant 0 : index
    %c0_15 = arith.constant 0 : index
    %22 = vector.load %arg6[%c0_14, %c0_15] : memref<256x784xbf16, #tpu.memory_space<vmem>>, vector<256x784xbf16>
    tpu.vector_store %arg6[%c0_14, %c0_15], %21 {strides = array<i32>} : memref<256x784xbf16, #tpu.memory_space<vmem>>, vector<256x784xbf16>,
    return
  }
  func.func @transform_0(%arg0: i32) -> (i32, i32) {
    %c0_i32 = arith.constant 0 : i32
    %c0_i32_0 = arith.constant 0 : i32
    return %arg0, %c0_i32 : i32, i32
  }
  func.func @transform_1(%arg0: i32) -> (i32, i32) {
    %c0_i32 = arith.constant 0 : i32
    %c0_i32_0 = arith.constant 0 : i32
    %c0_i32_1 = arith.constant 0 : i32
    return %c0_i32, %c0_i32_0 : i32, i32
  }
  func.func @transform_2(%arg0: i32) -> (i32, i32) {
    %c0_i32 = arith.constant 0 : i32
    %c0_i32_0 = arith.constant 0 : i32
    %c0_i32_1 = arith.constant 0 : i32
    return %c0_i32, %c0_i32_0 : i32, i32
  }
  func.func @transform_3(%arg0: i32) -> (i32, i32) {
    %c0_i32 = arith.constant 0 : i32
    %c0_i32_0 = arith.constant 0 : i32
    %c0_i32_1 = arith.constant 0 : i32
    return %c0_i32, %c0_i32_0 : i32, i32
  }
  func.func @transform_4(%arg0: i32) -> (i32, i32) {
    %c0_i32 = arith.constant 0 : i32
    %c0_i32_0 = arith.constant 0 : i32
    %c0_i32_1 = arith.constant 0 : i32
    return %c0_i32, %c0_i32_0 : i32, i32
  }
  func.func @transform_5(%arg0: i32) -> (i32, i32) {
    %c0_i32 = arith.constant 0 : i32
    %c0_i32_0 = arith.constant 0 : i32
    return %arg0, %c0_i32 : i32, i32
  }
}

</mosaic_0001>

<llo_original>
// kernel: tpu_custom_call.1
$region0: #{tpu_custom_call.1}
  #allocation0 [shape = 'u32[]', space=smem, size = 0x4, offset = 0x4, fixed_abs, tag = 'smem constant byte address 0x4 - core index']
  #allocation1 [shape = 'u32[144,128]{1,0:T(1,128)}', space=vmem, size = 0x12000, scoped, tag = 'internal scratch']
  %s0 = inlined_call_operand.vmem [shape: bf16[512,32], index: 0, kind: input, shape index: {}]
  %s1 = inlined_call_operand.vmem [shape: bf16[32,128], index: 1, kind: input, shape index: {}]
  %s2 = inlined_call_operand.vmem [shape: f32[1,128], index: 2, kind: input, shape index: {}]
  %s3 = inlined_call_operand.vmem [shape: bf16[128,784], index: 3, kind: input, shape index: {}]
  %s4 = inlined_call_operand.vmem [shape: f32[1,784], index: 4, kind: input, shape index: {}]
  %s5 = inlined_call_operand.vmem [shape: bf16[512,784], index: 5, kind: output, shape index: {}]
  %s6 = sld [smem:[#allocation0]]
  $region53: #{tpu_custom_call.1} parent=0
    _
  %s8 = ssub.s32 1, %s6
  %s9 = scalar_select 0, %s8, %s6
  loop: start=0, step=1, limit=4
  $region2: #{tpu_custom_call.1} parent=0 // loop_pre_header
    _
  $region3: #{tpu_custom_call.1} parent=0 // loop_header
    %s11 = sphi 0, %s15
    %p12 = scmp.ge.s32.totalorder %s11, 4
    %s21 = sphi 0, %s23
    %s24 = sphi 0, %s21
    %s25 = sphi 0, %s24
    %s41 = sphi 0, %s25
    %s45 = sphi 0, %s45
    %s47 = sphi 0, %s45
    %s48 = sphi 0, %s47
    %s62 = sphi 0, %s48
    %s66 = sphi 0, %s66
    %s68 = sphi 0, %s66
    %s69 = sphi 0, %s68
    %s83 = sphi 0, %s69
    %s87 = sphi 0, %s87
    %s89 = sphi 0, %s87
    %s90 = sphi 0, %s89
    %s104 = sphi 0, %s90
    %s108 = sphi 0, %s108
    %s110 = sphi 0, %s108
    %s111 = sphi 0, %s110
    %s125 = sphi 0, %s111
    %s131 = sphi 0, %s133
    %s134 = sphi 0, %s131
    %s135 = sphi 0, %s134
    %s151 = sphi 0, %s135
  $region4: #{tpu_custom_call.1} parent=0 // loop_header_branch
    %14 = sbr.rel (%p12) target = $region8
  $region5: #{tpu_custom_call.1} parent=0 // loop_body
    %s16 = ssub.s32 %s11, 1
    %s17 = ssub.s32 %s11, 2
    %s18 = sadd.s32 %s11, 1
    %s19 = ssub.s32 %s11, %s18
    %p20 = scmp.eq.s32.totalorder %s19, 0
    %s22 = sadd.s32 %s21, 1
    %s23 = scalar_select %p20, %s21, %s22
    %p26 = pneg %p20
    %p27 = scmp.eq.s32.totalorder %s11, 1
    %p28 = por %p26, %p27
    %p29 = scmp.ne.s32.totalorder %s21, %s24
    %p30 = scmp.eq.s32.totalorder %s11, 0
    %p31 = por %p29, %p30
    %p32 = scmp.ne.s32.totalorder %s21, %s24
    %p33 = scmp.eq.s32.totalorder %s16, 1
    %p34 = por %p32, %p33
    %p35 = scmp.ne.s32.totalorder %s24, %s25
    %p36 = scmp.eq.s32.totalorder %s16, 0
    %p37 = por %p35, %p36
    %p38 = scmp.ne.s32.totalorder %s24, %s25
    %p39 = scmp.eq.s32.totalorder %s17, 1
    %p40 = por %p38, %p39
    %p42 = scmp.ne.s32.totalorder %s25, %s41
    %p43 = scmp.eq.s32.totalorder %s17, 0
    %p44 = por %p42, %p43
    %s46 = sadd.s32 %s45, 1
    %p49 = scmp.eq.s32.totalorder %s11, 1
    %p50 = scmp.ne.s32.totalorder %s45, %s47
    %p51 = scmp.eq.s32.totalorder %s11, 0
    %p52 = por %p50, %p51
    %p53 = scmp.ne.s32.totalorder %s45, %s47
    %p54 = scmp.eq.s32.totalorder %s16, 1
    %p55 = por %p53, %p54
    %p56 = scmp.ne.s32.totalorder %s47, %s48
    %p57 = scmp.eq.s32.totalorder %s16, 0
    %p58 = por %p56, %p57
    %p59 = scmp.ne.s32.totalorder %s47, %s48
    %p60 = scmp.eq.s32.totalorder %s17, 1
    %p61 = por %p59, %p60
    %p63 = scmp.ne.s32.totalorder %s48, %s62
    %p64 = scmp.eq.s32.totalorder %s17, 0
    %p65 = por %p63, %p64
    %s67 = sadd.s32 %s66, 1
    %p70 = scmp.eq.s32.totalorder %s11, 1
    %p71 = scmp.ne.s32.totalorder %s66, %s68
    %p72 = scmp.eq.s32.totalorder %s11, 0
    %p73 = por %p71, %p72
    %p74 = scmp.ne.s32.totalorder %s66, %s68
    %p75 = scmp.eq.s32.totalorder %s16, 1
    %p76 = por %p74, %p75
    %p77 = scmp.ne.s32.totalorder %s68, %s69
    %p78 = scmp.eq.s32.totalorder %s16, 0
    %p79 = por %p77, %p78
    %p80 = scmp.ne.s32.totalorder %s68, %s69
    %p81 = scmp.eq.s32.totalorder %s17, 1
    %p82 = por %p80, %p81
    %p84 = scmp.ne.s32.totalorder %s69, %s83
    %p85 = scmp.eq.s32.totalorder %s17, 0
    %p86 = por %p84, %p85
    %s88 = sadd.s32 %s87, 1
    %p91 = scmp.eq.s32.totalorder %s11, 1
    %p92 = scmp.ne.s32.totalorder %s87, %s89
    %p93 = scmp.eq.s32.totalorder %s11, 0
    %p94 = por %p92, %p93
    %p95 = scmp.ne.s32.totalorder %s87, %s89
    %p96 = scmp.eq.s32.totalorder %s16, 1
    %p97 = por %p95, %p96
    %p98 = scmp.ne.s32.totalorder %s89, %s90
    %p99 = scmp.eq.s32.totalorder %s16, 0
    %p100 = por %p98, %p99
    %p101 = scmp.ne.s32.totalorder %s89, %s90
    %p102 = scmp.eq.s32.totalorder %s17, 1
    %p103 = por %p101, %p102
    %p105 = scmp.ne.s32.totalorder %s90, %s104
    %p106 = scmp.eq.s32.totalorder %s17, 0
    %p107 = por %p105, %p106
    %s109 = sadd.s32 %s108, 1
    %p112 = scmp.eq.s32.totalorder %s11, 1
    %p113 = scmp.ne.s32.totalorder %s108, %s110
    %p114 = scmp.eq.s32.totalorder %s11, 0
    %p115 = por %p113, %p114
    %p116 = scmp.ne.s32.totalorder %s108, %s110
    %p117 = scmp.eq.s32.totalorder %s16, 1
    %p118 = por %p116, %p117
    %p119 = scmp.ne.s32.totalorder %s110, %s111
    %p120 = scmp.eq.s32.totalorder %s16, 0
    %p121 = por %p119, %p120
    %p122 = scmp.ne.s32.totalorder %s110, %s111
    %p123 = scmp.eq.s32.totalorder %s17, 1
    %p124 = por %p122, %p123
    %p126 = scmp.ne.s32.totalorder %s111, %s125
    %p127 = scmp.eq.s32.totalorder %s17, 0
    %p128 = por %p126, %p127
    %s129 = ssub.s32 %s11, %s18
    %p130 = scmp.eq.s32.totalorder %s129, 0
    %s132 = sadd.s32 %s131, 1
    %s133 = scalar_select %p130, %s131, %s132
    %p136 = pneg %p130
    %p137 = scmp.eq.s32.totalorder %s11, 1
    %p138 = por %p136, %p137
    %p139 = scmp.ne.s32.totalorder %s131, %s134
    %p140 = scmp.eq.s32.totalorder %s11, 0
    %p141 = por %p139, %p140
    %p142 = scmp.ne.s32.totalorder %s131, %s134
    %p143 = scmp.eq.s32.totalorder %s16, 1
    %p144 = por %p142, %p143
    %p145 = scmp.ne.s32.totalorder %s134, %s135
    %p146 = scmp.eq.s32.totalorder %s16, 0
    %p147 = por %p145, %p146
    %p148 = scmp.ne.s32.totalorder %s134, %s135
    %p149 = scmp.eq.s32.totalorder %s17, 1
    %p150 = por %p148, %p149
    %p152 = scmp.ne.s32.totalorder %s135, %s151
    %p153 = scmp.eq.s32.totalorder %s17, 0
    %p154 = por %p152, %p153
    %p155 = scmp.le.s32.totalorder 1, %s11
    %p156 = scmp.lt.s32.totalorder %s11, 3
    %p157 = pnand %p155, %p156
    %p158 = pneg %p157
    // Predicated region
    $region9: #{tpu_custom_call.1} parent=5 // pred_check
      _
    $region10: #{tpu_custom_call.1} parent=5 // pred_check_branch
      %160 = sbr.rel (%p157) target = $region12
    $region11: #{tpu_custom_call.1} parent=5 // pred_region
      %s161 = ssub.s32 %s11, 1
      // Predicated region
      $region13: #{tpu_custom_call.1} parent=11 // pred_check
        %p162 = pneg %p58
      $region14: #{tpu_custom_call.1} parent=11 // pred_check_branch
        %164 = sbr.rel (%p162) target = $region16
      $region15: #{tpu_custom_call.1} parent=11 // pred_region
        _
      $region16: #{tpu_custom_call.1} parent=11 // pred_fallthru
        _
      // Predicated region
      $region17: #{tpu_custom_call.1} parent=11 // pred_check
        %p165 = pneg %p79
      $region18: #{tpu_custom_call.1} parent=11 // pred_check_branch
        %167 = sbr.rel (%p165) target = $region20
      $region19: #{tpu_custom_call.1} parent=11 // pred_region
        _
      $region20: #{tpu_custom_call.1} parent=11 // pred_fallthru
        _
      // Predicated region
      $region21: #{tpu_custom_call.1} parent=11 // pred_check
        %p168 = pneg %p100
      $region22: #{tpu_custom_call.1} parent=11 // pred_check_branch
        %170 = sbr.rel (%p168) target = $region24
      $region23: #{tpu_custom_call.1} parent=11 // pred_region
        _
      $region24: #{tpu_custom_call.1} parent=11 // pred_fallthru
        _
      // Predicated region
      $region25: #{tpu_custom_call.1} parent=11 // pred_check
        %p171 = pneg %p121
      $region26: #{tpu_custom_call.1} parent=11 // pred_check_branch
        %173 = sbr.rel (%p171) target = $region28
      $region27: #{tpu_custom_call.1} parent=11 // pred_region
        _
      $region28: #{tpu_custom_call.1} parent=11 // pred_fallthru
        _
    $region12: #{tpu_custom_call.1} parent=5 // pred_fallthru
      _
    %p174 = scmp.lt.s32.totalorder %s11, 2
    // Predicated region
    $region29: #{tpu_custom_call.1} parent=5 // pred_check
      %p175 = pneg %p174
    $region30: #{tpu_custom_call.1} parent=5 // pred_check_branch
      %177 = sbr.rel (%p175) target = $region32
    $region31: #{tpu_custom_call.1} parent=5 // pred_region
      // Predicated region
      $region33: #{tpu_custom_call.1} parent=31 // pred_check
        %p178 = pneg %p31
      $region34: #{tpu_custom_call.1} parent=31 // pred_check_branch
        %180 = sbr.rel (%p178) target = $region36
      $region35: #{tpu_custom_call.1} parent=31 // pred_region
        %s181 = smul.u32 32, %s11
        %p182 = scmp.lt.s32.totalorder %s181, 63
        %s183 = scalar_select %p182, %s181, 63
        %s184 = smul.addr %s183, 4
        %s185 = scalar_lea.vmem %s0, %s184
        %s186 = smul.u32 32, %s11
      $region36: #{tpu_custom_call.1} parent=31 // pred_fallthru
        _
    $region32: #{tpu_custom_call.1} parent=5 // pred_fallthru
      _
    %p187 = scmp.le.s32.totalorder 1, %s11
    %p188 = scmp.lt.s32.totalorder %s11, 3
    %p189 = pnand %p187, %p188
    %p190 = pneg %p189
    // Predicated region
    $region37: #{tpu_custom_call.1} parent=5 // pred_check
      _
    $region38: #{tpu_custom_call.1} parent=5 // pred_check_branch
      %192 = sbr.rel (%p189) target = $region40
    $region39: #{tpu_custom_call.1} parent=5 // pred_region
      %s193 = ssub.s32 %s11, 1
      %s194 = smul.u32 32, %s16
      %p195 = scmp.lt.s32.totalorder %s194, 63
      %s196 = scalar_select %p195, %s194, 63
      %s197 = smul.addr %s196, 4
      %s198 = scalar_lea.vmem %s0, %s197
      %p199 = pneg %p37
      %p200 = pneg %p34
      %p201 = pneg %p58
      %p202 = pneg %p55
      %p203 = pneg %p79
      %p204 = pneg %p76
      %p205 = pneg %p100
      %p206 = pneg %p97
      %p207 = pneg %p121
      %p208 = pneg %p118
      %p209 = pneg %p147
      %p210 = pneg %p144
      %s211 = smul.u32 32, %s16
      %p212 = scmp.lt.s32.totalorder %s211, 63
      %s213 = scalar_select %p212, %s211, 63
      %s214 = smul.addr %s213, 7
      %s215 = smul.addr %s214, 4
      %s216 = scalar_lea.vmem %s5, %s215
      %s217 = smul.u32 32, %s16
      %p218 = scmp.lt.s32.totalorder %s217, 63
      %s219 = scalar_select %p218, %s217, 63
      %s220 = smul.addr %s219, 4
      %s221 = scalar_lea.vmem %s0, %s220
      %s222 = smul.u32 32, %s16
      %s223 = smul.u32 32, %s16
      %p224 = scmp.lt.s32.totalorder %s223, 63
      %s225 = scalar_select %p224, %s223, 63
      %s226 = smul.addr %s225, 7
      %s227 = smul.addr %s226, 4
      %s228 = scalar_lea.vmem %s5, %s227
      %s229 = smul.u32 32, %s16
      %v231 = vld [vmem:[%s221] sm:$0xf]
      %v232 = vld [vmem:[%s221 + $0x4] sm:$0xf]
      %v233 = vld [vmem:[%s221 + $0x8] sm:$0xf]
      %v234 = vld [vmem:[%s221 + $0xc] sm:$0xf]
      %v235 = vld [vmem:[%s221 + $0x10] sm:$0xf]
      %v236 = vld [vmem:[%s221 + $0x14] sm:$0xf]
      %v237 = vld [vmem:[%s221 + $0x18] sm:$0xf]
      %v238 = vld [vmem:[%s221 + $0x1c] sm:$0xf]
      %v239 = vld [vmem:[%s221 + $0x20] sm:$0xf]
      %v240 = vld [vmem:[%s221 + $0x24] sm:$0xf]
      %v241 = vld [vmem:[%s221 + $0x28] sm:$0xf]
      %v242 = vld [vmem:[%s221 + $0x2c] sm:$0xf]
      %v243 = vld [vmem:[%s221 + $0x30] sm:$0xf]
      %v244 = vld [vmem:[%s221 + $0x34] sm:$0xf]
      %v245 = vld [vmem:[%s221 + $0x38] sm:$0xf]
      %v246 = vld [vmem:[%s221 + $0x3c] sm:$0xf]
      %v247 = vld [vmem:[%s221 + $0x40] sm:$0xf]
      %v248 = vld [vmem:[%s221 + $0x44] sm:$0xf]
      %v249 = vld [vmem:[%s221 + $0x48] sm:$0xf]
      %v250 = vld [vmem:[%s221 + $0x4c] sm:$0xf]
      %v251 = vld [vmem:[%s221 + $0x50] sm:$0xf]
      %v252 = vld [vmem:[%s221 + $0x54] sm:$0xf]
      %v253 = vld [vmem:[%s221 + $0x58] sm:$0xf]
      %v254 = vld [vmem:[%s221 + $0x5c] sm:$0xf]
      %v255 = vld [vmem:[%s221 + $0x60] sm:$0xf]
      %v256 = vld [vmem:[%s221 + $0x64] sm:$0xf]
      %v257 = vld [vmem:[%s221 + $0x68] sm:$0xf]
      %v258 = vld [vmem:[%s221 + $0x6c] sm:$0xf]
      %v259 = vld [vmem:[%s221 + $0x70] sm:$0xf]
      %v260 = vld [vmem:[%s221 + $0x74] sm:$0xf]
      %v261 = vld [vmem:[%s221 + $0x78] sm:$0xf]
      %v262 = vld [vmem:[%s221 + $0x7c] sm:$0xf]
      %v263 = vld [vmem:[%s1] sm:$0xf]
      %v264 = vld [vmem:[%s1 + $0x4] sm:$0xf]
      %v265 = vld [vmem:[%s1 + $0x8] sm:$0xf]
      %v266 = vld [vmem:[%s1 + $0xc] sm:$0xf]
      %v267 = vld [vmem:[%s2] sm:$0x1]
      %v269 = vlaneseq
      %v270 = vshrl.u32 %v269, 7
      %v271 = vsub.s32 0, %v270
      %v272 = vrot.slane %v267, %v271
      %v306 = vunpack.c.l.b16 %v231
      %v307 = vunpack.c.l.b16 %v232
      %v308 = vunpack.c.l.b16 %v233
      %v309 = vunpack.c.l.b16 %v234
      %v310 = vunpack.c.l.b16 %v235
      %v311 = vunpack.c.l.b16 %v236
      %v312 = vunpack.c.l.b16 %v237
      %v313 = vunpack.c.l.b16 %v238
      %v314 = vunpack.c.l.b16 %v239
      %v315 = vunpack.c.l.b16 %v240
      %v316 = vunpack.c.l.b16 %v241
      %v317 = vunpack.c.l.b16 %v242
      %v318 = vunpack.c.l.b16 %v243
      %v319 = vunpack.c.l.b16 %v244
      %v320 = vunpack.c.l.b16 %v245
      %v321 = vunpack.c.l.b16 %v246
      %v322 = vunpack.c.l.b16 %v247
      %v323 = vunpack.c.l.b16 %v248
      %v324 = vunpack.c.l.b16 %v249
      %v325 = vunpack.c.l.b16 %v250
      %v326 = vunpack.c.l.b16 %v251
      %v327 = vunpack.c.l.b16 %v252
      %v328 = vunpack.c.l.b16 %v253
      %v329 = vunpack.c.l.b16 %v254
      %v330 = vunpack.c.l.b16 %v255
      %v331 = vunpack.c.l.b16 %v256
      %v332 = vunpack.c.l.b16 %v257
      %v333 = vunpack.c.l.b16 %v258
      %v334 = vunpack.c.l.b16 %v259
      %v335 = vunpack.c.l.b16 %v260
      %v336 = vunpack.c.l.b16 %v261
      %v337 = vunpack.c.l.b16 %v262
      %v338 = vpack.c.b16 %v307, %v306
      %v339 = vpack.c.b16 %v309, %v308
      %v340 = vpack.c.b16 %v311, %v310
      %v341 = vpack.c.b16 %v313, %v312
      %v342 = vpack.c.b16 %v315, %v314
      %v343 = vpack.c.b16 %v317, %v316
      %v344 = vpack.c.b16 %v319, %v318
      %v345 = vpack.c.b16 %v321, %v320
      %v346 = vpack.c.b16 %v323, %v322
      %v347 = vpack.c.b16 %v325, %v324
      %v348 = vpack.c.b16 %v327, %v326
      %v349 = vpack.c.b16 %v329, %v328
      %v350 = vpack.c.b16 %v331, %v330
      %v351 = vpack.c.b16 %v333, %v332
      %v352 = vpack.c.b16 %v335, %v334
      %v353 = vpack.c.b16 %v337, %v336
      %v358 = vunpack.c.l.b16 %v263
      %v359 = vunpack.c.l.b16 %v264
      %v360 = vunpack.c.l.b16 %v265
      %v361 = vunpack.c.l.b16 %v266
      %v362 = vpack.c.b16 %v359, %v358
      %v363 = vpack.c.b16 %v361, %v360
      %vm366 = vcmask 261120
      %v368 = vsel %vm366, %v338, 0
      %v371 = vsel %vm366, %v339, 0
      %v374 = vsel %vm366, %v340, 0
      %v377 = vsel %vm366, %v341, 0
      %v380 = vsel %vm366, %v342, 0
      %v383 = vsel %vm366, %v343, 0
      %v386 = vsel %vm366, %v344, 0
      %v389 = vsel %vm366, %v345, 0
      %v392 = vsel %vm366, %v346, 0
      %v395 = vsel %vm366, %v347, 0
      %v398 = vsel %vm366, %v348, 0
      %v401 = vsel %vm366, %v349, 0
      %v404 = vsel %vm366, %v350, 0
      %v407 = vsel %vm366, %v351, 0
      %v410 = vsel %vm366, %v352, 0
      %v413 = vsel %vm366, %v353, 0
      %415 = vmatprep.subr.bf16.mxu0 0
      %416 = vmatpush1.bf16.msra.mxu0 0
      %417 = vmatprep.subr.bf16.mxu0 0
      %418 = vmatpush1.bf16.msra.mxu0 0
      %419 = vmatprep.subr.bf16.mxu0 0
      %420 = vmatpush1.bf16.msra.mxu0 0
      %421 = vmatprep.subr.bf16.mxu0 0
      %422 = vmatpush1.bf16.msra.mxu0 0
      %423 = vmatprep.subr.bf16.mxu0 0
      %424 = vmatpush1.bf16.msra.mxu0 0
      %425 = vmatprep.subr.bf16.mxu0 0
      %426 = vmatpush1.bf16.msra.mxu0 0
      %427 = vmatprep.subr.bf16.mxu0 0
      %428 = vmatpush1.bf16.msra.mxu0 %v363
      %429 = vmatprep.subr.bf16.mxu0 0
      %430 = vmatpush1.bf16.msra.mxu0 %v362
      %431 = vmatprep.subr.bf16.mxu0 0
      %432 = vmatpush2.bf16.msra.mxu0 0
      %433 = vmatprep.subr.bf16.mxu0 0
      %434 = vmatpush2.bf16.msra.mxu0 0
      %435 = vmatprep.subr.bf16.mxu0 0
      %436 = vmatpush2.bf16.msra.mxu0 0
      %437 = vmatprep.subr.bf16.mxu0 0
      %438 = vmatpush2.bf16.msra.mxu0 0
      %439 = vmatprep.subr.bf16.mxu0 0
      %440 = vmatpush2.bf16.msra.mxu0 0
      %441 = vmatprep.subr.bf16.mxu0 0
      %442 = vmatpush2.bf16.msra.mxu0 0
      %443 = vmatprep.subr.bf16.mxu0 0
      %444 = vmatpush2.bf16.msra.mxu0 0
      %445 = vmatprep.subr.bf16.mxu0 0
      %446 = vmatpush2.bf16.msra.mxu0 0
      %447 = vmatprep.mubr.bf16.mxu0 0
      %448 = vmatmul.mubr.bf16.gmra.mxu0 %v368
      %v449 = vpop.f32.mrf.mxu0
      %v450 = vadd.f32 %v272, %v449
      %v451 = vpop.f32.mrf.mxu0
      %v452 = vpop.f32.mrf.mxu0
      %v453 = vadd.f32 %v272, %v452
      %v454 = vpop.f32.mrf.mxu0
      %455 = vmatprep.mubr.bf16.mxu0 0
      %456 = vmatmul.mubr.bf16.gmra.mxu0 %v371
      %v457 = vpop.f32.mrf.mxu0
      %v458 = vadd.f32 %v272, %v457
      %v459 = vpop.f32.mrf.mxu0
      %v460 = vpop.f32.mrf.mxu0
      %v461 = vadd.f32 %v272, %v460
      %v462 = vpop.f32.mrf.mxu0
      %463 = vmatprep.mubr.bf16.mxu0 0
      %464 = vmatmul.mubr.bf16.gmra.mxu0 %v374
      %v465 = vpop.f32.mrf.mxu0
      %v466 = vadd.f32 %v272, %v465
      %v467 = vpop.f32.mrf.mxu0
      %v468 = vpop.f32.mrf.mxu0
      %v469 = vadd.f32 %v272, %v468
      %v470 = vpop.f32.mrf.mxu0
      %471 = vmatprep.mubr.bf16.mxu0 0
      %472 = vmatmul.mubr.bf16.gmra.mxu0 %v377
      %v473 = vpop.f32.mrf.mxu0
      %v474 = vadd.f32 %v272, %v473
      %v475 = vpop.f32.mrf.mxu0
      %v476 = vpop.f32.mrf.mxu0
      %v477 = vadd.f32 %v272, %v476
      %v478 = vpop.f32.mrf.mxu0
      %479 = vmatprep.mubr.bf16.mxu0 0
      %480 = vmatmul.mubr.bf16.gmra.mxu0 %v380
      %v481 = vpop.f32.mrf.mxu0
      %v482 = vadd.f32 %v272, %v481
      %v483 = vpop.f32.mrf.mxu0
      %v484 = vpop.f32.mrf.mxu0
      %v485 = vadd.f32 %v272, %v484
      %v486 = vpop.f32.mrf.mxu0
      %487 = vmatprep.mubr.bf16.mxu0 0
      %488 = vmatmul.mubr.bf16.gmra.mxu0 %v383
      %v489 = vpop.f32.mrf.mxu0
      %v490 = vadd.f32 %v272, %v489
      %v491 = vpop.f32.mrf.mxu0
      %v492 = vpop.f32.mrf.mxu0
      %v493 = vadd.f32 %v272, %v492
      %v494 = vpop.f32.mrf.mxu0
      %495 = vmatprep.mubr.bf16.mxu0 0
      %496 = vmatmul.mubr.bf16.gmra.mxu0 %v386
      %v497 = vpop.f32.mrf.mxu0
      %v498 = vadd.f32 %v272, %v497
      %v499 = vpop.f32.mrf.mxu0
      %v500 = vpop.f32.mrf.mxu0
      %v501 = vadd.f32 %v272, %v500
      %v502 = vpop.f32.mrf.mxu0
      %503 = vmatprep.mubr.bf16.mxu0 0
      %504 = vmatmul.mubr.bf16.gmra.mxu0 %v389
      %v505 = vpop.f32.mrf.mxu0
      %v506 = vadd.f32 %v272, %v505
      %v507 = vpop.f32.mrf.mxu0
      %v508 = vpop.f32.mrf.mxu0
      %v509 = vadd.f32 %v272, %v508
      %v510 = vpop.f32.mrf.mxu0
      %511 = vmatprep.mubr.bf16.mxu0 0
      %512 = vmatmul.mubr.bf16.gmra.mxu0 %v392
      %v513 = vpop.f32.mrf.mxu0
      %v514 = vadd.f32 %v272, %v513
      %v515 = vpop.f32.mrf.mxu0
      %v516 = vpop.f32.mrf.mxu0
      %v517 = vadd.f32 %v272, %v516
      %v518 = vpop.f32.mrf.mxu0
      %519 = vmatprep.mubr.bf16.mxu0 0
      %520 = vmatmul.mubr.bf16.gmra.mxu0 %v395
      %v521 = vpop.f32.mrf.mxu0
      %v522 = vadd.f32 %v272, %v521
      %v523 = vpop.f32.mrf.mxu0
      %v524 = vpop.f32.mrf.mxu0
      %v525 = vadd.f32 %v272, %v524
      %v526 = vpop.f32.mrf.mxu0
      %527 = vmatprep.mubr.bf16.mxu0 0
      %528 = vmatmul.mubr.bf16.gmra.mxu0 %v398
      %v529 = vpop.f32.mrf.mxu0
      %v530 = vadd.f32 %v272, %v529
      %v531 = vpop.f32.mrf.mxu0
      %v532 = vpop.f32.mrf.mxu0
      %v533 = vadd.f32 %v272, %v532
      %v534 = vpop.f32.mrf.mxu0
      %535 = vmatprep.mubr.bf16.mxu0 0
      %536 = vmatmul.mubr.bf16.gmra.mxu0 %v401
      %v537 = vpop.f32.mrf.mxu0
      %v538 = vadd.f32 %v272, %v537
      %v539 = vpop.f32.mrf.mxu0
      %v540 = vpop.f32.mrf.mxu0
      %v541 = vadd.f32 %v272, %v540
      %v542 = vpop.f32.mrf.mxu0
      %543 = vmatprep.mubr.bf16.mxu0 0
      %544 = vmatmul.mubr.bf16.gmra.mxu0 %v404
      %v545 = vpop.f32.mrf.mxu0
      %v546 = vadd.f32 %v272, %v545
      %v547 = vpop.f32.mrf.mxu0
      %v548 = vpop.f32.mrf.mxu0
      %v549 = vadd.f32 %v272, %v548
      %v550 = vpop.f32.mrf.mxu0
      %551 = vmatprep.mubr.bf16.mxu0 0
      %552 = vmatmul.mubr.bf16.gmra.mxu0 %v407
      %v553 = vpop.f32.mrf.mxu0
      %v554 = vadd.f32 %v272, %v553
      %v555 = vpop.f32.mrf.mxu0
      %v556 = vpop.f32.mrf.mxu0
      %v557 = vadd.f32 %v272, %v556
      %v558 = vpop.f32.mrf.mxu0
      %559 = vmatprep.mubr.bf16.mxu0 0
      %560 = vmatmul.mubr.bf16.gmra.mxu0 %v410
      %v561 = vpop.f32.mrf.mxu0
      %v562 = vadd.f32 %v272, %v561
      %v563 = vpop.f32.mrf.mxu0
      %v564 = vpop.f32.mrf.mxu0
      %v565 = vadd.f32 %v272, %v564
      %v566 = vpop.f32.mrf.mxu0
      %567 = vmatprep.mubr.bf16.mxu0 0
      %568 = vmatmul.mubr.bf16.gmra.mxu0 %v413
      %v569 = vpop.f32.mrf.mxu0
      %v570 = vadd.f32 %v272, %v569
      %v571 = vpop.f32.mrf.mxu0
      %v572 = vpop.f32.mrf.mxu0
      %v573 = vadd.f32 %v272, %v572
      %v574 = vpop.f32.mrf.mxu0
      %575 = vdwg.mxu0
      %v576 = vmax.f32 %v450, 0.0
      %v577 = vmax.f32 %v453, 0.0
      %v578 = vmax.f32 %v458, 0.0
      %v579 = vmax.f32 %v461, 0.0
      %v580 = vmax.f32 %v466, 0.0
      %v581 = vmax.f32 %v469, 0.0
      %v582 = vmax.f32 %v474, 0.0
      %v583 = vmax.f32 %v477, 0.0
      %v584 = vmax.f32 %v482, 0.0
      %v585 = vmax.f32 %v485, 0.0
      %v586 = vmax.f32 %v490, 0.0
      %v587 = vmax.f32 %v493, 0.0
      %v588 = vmax.f32 %v498, 0.0
      %v589 = vmax.f32 %v501, 0.0
      %v590 = vmax.f32 %v506, 0.0
      %v591 = vmax.f32 %v509, 0.0
      %v592 = vmax.f32 %v514, 0.0
      %v593 = vmax.f32 %v517, 0.0
      %v594 = vmax.f32 %v522, 0.0
      %v595 = vmax.f32 %v525, 0.0
      %v596 = vmax.f32 %v530, 0.0
      %v597 = vmax.f32 %v533, 0.0
      %v598 = vmax.f32 %v538, 0.0
      %v599 = vmax.f32 %v541, 0.0
      %v600 = vmax.f32 %v546, 0.0
      %v601 = vmax.f32 %v549, 0.0
      %v602 = vmax.f32 %v554, 0.0
      %v603 = vmax.f32 %v557, 0.0
      %v604 = vmax.f32 %v562, 0.0
      %v605 = vmax.f32 %v565, 0.0
      %v606 = vmax.f32 %v570, 0.0
      %v607 = vmax.f32 %v573, 0.0
      %v608 = vpack.c.bf16 %v577, %v576
      %v609 = vpack.c.bf16 %v579, %v578
      %v610 = vpack.c.bf16 %v581, %v580
      %v611 = vpack.c.bf16 %v583, %v582
      %v612 = vpack.c.bf16 %v585, %v584
      %v613 = vpack.c.bf16 %v587, %v586
      %v614 = vpack.c.bf16 %v589, %v588
      %v615 = vpack.c.bf16 %v591, %v590
      %v616 = vpack.c.bf16 %v593, %v592
      %v617 = vpack.c.bf16 %v595, %v594
      %v618 = vpack.c.bf16 %v597, %v596
      %v619 = vpack.c.bf16 %v599, %v598
      %v620 = vpack.c.bf16 %v601, %v600
      %v621 = vpack.c.bf16 %v603, %v602
      %v622 = vpack.c.bf16 %v605, %v604
      %v623 = vpack.c.bf16 %v607, %v606
      %v624 = vld [vmem:[%s3] sm:$0xff]
      %v625 = vld [vmem:[%s3 + $0x8] sm:$0xff]
      %v626 = vld [vmem:[%s3 + $0x10] sm:$0xff]
      %v627 = vld [vmem:[%s3 + $0x18] sm:$0xf]
      %v628 = vld [vmem:[%s3 + $0x1c] sm:$0xff]
      %v629 = vld [vmem:[%s3 + $0x24] sm:$0xff]
      %v630 = vld [vmem:[%s3 + $0x2c] sm:$0xff]
      %v631 = vld [vmem:[%s3 + $0x34] sm:$0xf]
      %v632 = vld [vmem:[%s3 + $0x38] sm:$0xff]
      %v633 = vld [vmem:[%s3 + $0x40] sm:$0xff]
      %v634 = vld [vmem:[%s3 + $0x48] sm:$0xff]
      %v635 = vld [vmem:[%s3 + $0x50] sm:$0xf]
      %v636 = vld [vmem:[%s3 + $0x54] sm:$0xff]
      %v637 = vld [vmem:[%s3 + $0x5c] sm:$0xff]
      %v638 = vld [vmem:[%s3 + $0x64] sm:$0xff]
      %v639 = vld [vmem:[%s3 + $0x6c] sm:$0xf]
      %v640 = vld [vmem:[%s3 + $0x70] sm:$0xff]
      %v641 = vld [vmem:[%s3 + $0x78] sm:$0xff]
      %v642 = vld [vmem:[%s3 + $0x80] sm:$0xff]
      %v643 = vld [vmem:[%s3 + $0x88] sm:$0xf]
      %v644 = vld [vmem:[%s3 + $0x8c] sm:$0xff]
      %v645 = vld [vmem:[%s3 + $0x94] sm:$0xff]
      %v646 = vld [vmem:[%s3 + $0x9c] sm:$0xff]
      %v647 = vld [vmem:[%s3 + $0xa4] sm:$0xf]
      %v648 = vld [vmem:[%s3 + $0xa8] sm:$0xff]
      %v649 = vld [vmem:[%s3 + $0xb0] sm:$0xff]
      %v650 = vld [vmem:[%s3 + $0xb8] sm:$0xff]
      %v651 = vld [vmem:[%s3 + $0xc0] sm:$0xf]
      %v652 = vld [vmem:[%s3 + $0xc4] sm:$0xff]
      %v653 = vld [vmem:[%s3 + $0xcc] sm:$0xff]
      %v654 = vld [vmem:[%s3 + $0xd4] sm:$0xff]
      %v655 = vld [vmem:[%s3 + $0xdc] sm:$0xf]
      %v656 = vld [vmem:[%s3 + $0xe0] sm:$0xff]
      %v657 = vld [vmem:[%s3 + $0xe8] sm:$0xff]
      %v658 = vld [vmem:[%s3 + $0xf0] sm:$0xff]
      %v659 = vld [vmem:[%s3 + $0xf8] sm:$0xf]
      %v660 = vld [vmem:[%s3 + $0xfc] sm:$0xff]
      %v661 = vld [vmem:[%s3 + $0x104] sm:$0xff]
      %v662 = vld [vmem:[%s3 + $0x10c] sm:$0xff]
      %v663 = vld [vmem:[%s3 + $0x114] sm:$0xf]
      %v664 = vld [vmem:[%s3 + $0x118] sm:$0xff]
      %v665 = vld [vmem:[%s3 + $0x120] sm:$0xff]
      %v666 = vld [vmem:[%s3 + $0x128] sm:$0xff]
      %v667 = vld [vmem:[%s3 + $0x130] sm:$0xf]
      %v668 = vld [vmem:[%s3 + $0x134] sm:$0xff]
      %v669 = vld [vmem:[%s3 + $0x13c] sm:$0xff]
      %v670 = vld [vmem:[%s3 + $0x144] sm:$0xff]
      %v671 = vld [vmem:[%s3 + $0x14c] sm:$0xf]
      %v672 = vld [vmem:[%s3 + $0x150] sm:$0xff]
      %v673 = vld [vmem:[%s3 + $0x158] sm:$0xff]
      %v674 = vld [vmem:[%s3 + $0x160] sm:$0xff]
      %v675 = vld [vmem:[%s3 + $0x168] sm:$0xf]
      %v676 = vld [vmem:[%s3 + $0x16c] sm:$0xff]
      %v677 = vld [vmem:[%s3 + $0x174] sm:$0xff]
      %v678 = vld [vmem:[%s3 + $0x17c] sm:$0xff]
      %v679 = vld [vmem:[%s3 + $0x184] sm:$0xf]
      %v680 = vld [vmem:[%s3 + $0x188] sm:$0xff]
      %v681 = vld [vmem:[%s3 + $0x190] sm:$0xff]
      %v682 = vld [vmem:[%s3 + $0x198] sm:$0xff]
      %v683 = vld [vmem:[%s3 + $0x1a0] sm:$0xf]
      %v684 = vld [vmem:[%s3 + $0x1a4] sm:$0xff]
      %v685 = vld [vmem:[%s3 + $0x1ac] sm:$0xff]
      %v686 = vld [vmem:[%s3 + $0x1b4] sm:$0xff]
      %v687 = vld [vmem:[%s3 + $0x1bc] sm:$0xf]
      %v688 = vld [vmem:[%s4] sm:$0x7f]
      %v690 = vlaneseq
      %v691 = vshrl.u32 %v690, 7
      %v692 = vsub.s32 0, %v691
      %v693 = vrot.slane %v688, %v692
      %v694 = vlaneseq
      %v695 = vshrl.u32 %v694, 7
      %v696 = vsub.s32 1, %v695
      %v697 = vrot.slane %v688, %v696
      %v698 = vlaneseq
      %v699 = vshrl.u32 %v698, 7
      %v700 = vsub.s32 2, %v699
      %v701 = vrot.slane %v688, %v700
      %v702 = vlaneseq
      %v703 = vshrl.u32 %v702, 7
      %v704 = vsub.s32 3, %v703
      %v705 = vrot.slane %v688, %v704
      %v706 = vlaneseq
      %v707 = vshrl.u32 %v706, 7
      %v708 = vsub.s32 4, %v707
      %v709 = vrot.slane %v688, %v708
      %v710 = vlaneseq
      %v711 = vshrl.u32 %v710, 7
      %v712 = vsub.s32 5, %v711
      %v713 = vrot.slane %v688, %v712
      %v714 = vlaneseq
      %v715 = vshrl.u32 %v714, 7
      %v716 = vsub.s32 6, %v715
      %v717 = vrot.slane %v688, %v716
      %v789 = vunpack.c.l.b16 %v624
      %v790 = vunpack.c.h.b16 %v624
      %v791 = vunpack.c.l.b16 %v625
      %v792 = vunpack.c.h.b16 %v625
      %v793 = vunpack.c.l.b16 %v626
      %v794 = vunpack.c.h.b16 %v626
      %v795 = vunpack.c.l.b16 %v627
      %v796 = vunpack.c.l.b16 %v628
      %v797 = vunpack.c.h.b16 %v628
      %v798 = vunpack.c.l.b16 %v629
      %v799 = vunpack.c.h.b16 %v629
      %v800 = vunpack.c.l.b16 %v630
      %v801 = vunpack.c.h.b16 %v630
      %v802 = vunpack.c.l.b16 %v631
      %v803 = vunpack.c.l.b16 %v632
      %v804 = vunpack.c.h.b16 %v632
      %v805 = vunpack.c.l.b16 %v633
      %v806 = vunpack.c.h.b16 %v633
      %v807 = vunpack.c.l.b16 %v634
      %v808 = vunpack.c.h.b16 %v634
      %v809 = vunpack.c.l.b16 %v635
      %v810 = vunpack.c.l.b16 %v636
      %v811 = vunpack.c.h.b16 %v636
      %v812 = vunpack.c.l.b16 %v637
      %v813 = vunpack.c.h.b16 %v637
      %v814 = vunpack.c.l.b16 %v638
      %v815 = vunpack.c.h.b16 %v638
      %v816 = vunpack.c.l.b16 %v639
      %v817 = vunpack.c.l.b16 %v640
      %v818 = vunpack.c.h.b16 %v640
      %v819 = vunpack.c.l.b16 %v641
      %v820 = vunpack.c.h.b16 %v641
      %v821 = vunpack.c.l.b16 %v642
      %v822 = vunpack.c.h.b16 %v642
      %v823 = vunpack.c.l.b16 %v643
      %v824 = vunpack.c.l.b16 %v644
      %v825 = vunpack.c.h.b16 %v644
      %v826 = vunpack.c.l.b16 %v645
      %v827 = vunpack.c.h.b16 %v645
      %v828 = vunpack.c.l.b16 %v646
      %v829 = vunpack.c.h.b16 %v646
      %v830 = vunpack.c.l.b16 %v647
      %v831 = vunpack.c.l.b16 %v648
      %v832 = vunpack.c.h.b16 %v648
      %v833 = vunpack.c.l.b16 %v649
      %v834 = vunpack.c.h.b16 %v649
      %v835 = vunpack.c.l.b16 %v650
      %v836 = vunpack.c.h.b16 %v650
      %v837 = vunpack.c.l.b16 %v651
      %v838 = vunpack.c.l.b16 %v652
      %v839 = vunpack.c.h.b16 %v652
      %v840 = vunpack.c.l.b16 %v653
      %v841 = vunpack.c.h.b16 %v653
      %v842 = vunpack.c.l.b16 %v654
      %v843 = vunpack.c.h.b16 %v654
      %v844 = vunpack.c.l.b16 %v655
      %v845 = vunpack.c.l.b16 %v656
      %v846 = vunpack.c.h.b16 %v656
      %v847 = vunpack.c.l.b16 %v657
      %v848 = vunpack.c.h.b16 %v657
      %v849 = vunpack.c.l.b16 %v658
      %v850 = vunpack.c.h.b16 %v658
      %v851 = vunpack.c.l.b16 %v659
      %v852 = vunpack.c.l.b16 %v660
      %v853 = vunpack.c.h.b16 %v660
      %v854 = vunpack.c.l.b16 %v661
      %v855 = vunpack.c.h.b16 %v661
      %v856 = vunpack.c.l.b16 %v662
      %v857 = vunpack.c.h.b16 %v662
      %v858 = vunpack.c.l.b16 %v663
      %v859 = vunpack.c.l.b16 %v664
      %v860 = vunpack.c.h.b16 %v664
      %v861 = vunpack.c.l.b16 %v665
      %v862 = vunpack.c.h.b16 %v665
      %v863 = vunpack.c.l.b16 %v666
      %v864 = vunpack.c.h.b16 %v666
      %v865 = vunpack.c.l.b16 %v667
      %v866 = vunpack.c.l.b16 %v668
      %v867 = vunpack.c.h.b16 %v668
      %v868 = vunpack.c.l.b16 %v669
      %v869 = vunpack.c.h.b16 %v669
      %v870 = vunpack.c.l.b16 %v670
      %v871 = vunpack.c.h.b16 %v670
      %v872 = vunpack.c.l.b16 %v671
      %v873 = vunpack.c.l.b16 %v672
      %v874 = vunpack.c.h.b16 %v672
      %v875 = vunpack.c.l.b16 %v673
      %v876 = vunpack.c.h.b16 %v673
      %v877 = vunpack.c.l.b16 %v674
      %v878 = vunpack.c.h.b16 %v674
      %v879 = vunpack.c.l.b16 %v675
      %v880 = vunpack.c.l.b16 %v676
      %v881 = vunpack.c.h.b16 %v676
      %v882 = vunpack.c.l.b16 %v677
      %v883 = vunpack.c.h.b16 %v677
      %v884 = vunpack.c.l.b16 %v678
      %v885 = vunpack.c.h.b16 %v678
      %v886 = vunpack.c.l.b16 %v679
      %v887 = vunpack.c.l.b16 %v680
      %v888 = vunpack.c.h.b16 %v680
      %v889 = vunpack.c.l.b16 %v681
      %v890 = vunpack.c.h.b16 %v681
      %v891 = vunpack.c.l.b16 %v682
      %v892 = vunpack.c.h.b16 %v682
      %v893 = vunpack.c.l.b16 %v683
      %v894 = vunpack.c.l.b16 %v684
      %v895 = vunpack.c.h.b16 %v684
      %v896 = vunpack.c.l.b16 %v685
      %v897 = vunpack.c.h.b16 %v685
      %v898 = vunpack.c.l.b16 %v686
      %v899 = vunpack.c.h.b16 %v686
      %v900 = vunpack.c.l.b16 %v687
      %v901 = vpack.c.b16 %v796, %v789
      %v902 = vpack.c.b16 %v797, %v790
      %v903 = vpack.c.b16 %v798, %v791
      %v904 = vpack.c.b16 %v799, %v792
      %v905 = vpack.c.b16 %v800, %v793
      %v906 = vpack.c.b16 %v801, %v794
      %v907 = vpack.c.b16 %v802, %v795
      %v908 = vpack.c.b16 %v810, %v803
      %v909 = vpack.c.b16 %v811, %v804
      %v910 = vpack.c.b16 %v812, %v805
      %v911 = vpack.c.b16 %v813, %v806
      %v912 = vpack.c.b16 %v814, %v807
      %v913 = vpack.c.b16 %v815, %v808
      %v914 = vpack.c.b16 %v816, %v809
      %v915 = vpack.c.b16 %v824, %v817
      %v916 = vpack.c.b16 %v825, %v818
      %v917 = vpack.c.b16 %v826, %v819
      %v918 = vpack.c.b16 %v827, %v820
      %v919 = vpack.c.b16 %v828, %v821
      %v920 = vpack.c.b16 %v829, %v822
      %v921 = vpack.c.b16 %v830, %v823
      %v922 = vpack.c.b16 %v838, %v831
      %v923 = vpack.c.b16 %v839, %v832
      %v924 = vpack.c.b16 %v840, %v833
      %v925 = vpack.c.b16 %v841, %v834
      %v926 = vpack.c.b16 %v842, %v835
      %v927 = vpack.c.b16 %v843, %v836
      %v928 = vpack.c.b16 %v844, %v837
      %v929 = vpack.c.b16 %v852, %v845
      %v930 = vpack.c.b16 %v853, %v846
      %v931 = vpack.c.b16 %v854, %v847
      %v932 = vpack.c.b16 %v855, %v848
      %v933 = vpack.c.b16 %v856, %v849
      %v934 = vpack.c.b16 %v857, %v850
      %v935 = vpack.c.b16 %v858, %v851
      %v936 = vpack.c.b16 %v866, %v859
      %v937 = vpack.c.b16 %v867, %v860
      %v938 = vpack.c.b16 %v868, %v861
      %v939 = vpack.c.b16 %v869, %v862
      %v940 = vpack.c.b16 %v870, %v863
      %v941 = vpack.c.b16 %v871, %v864
      %v942 = vpack.c.b16 %v872, %v865
      %v943 = vpack.c.b16 %v880, %v873
      %v944 = vpack.c.b16 %v881, %v874
      %v945 = vpack.c.b16 %v882, %v875
      %v946 = vpack.c.b16 %v883, %v876
      %v947 = vpack.c.b16 %v884, %v877
      %v948 = vpack.c.b16 %v885, %v878
      %v949 = vpack.c.b16 %v886, %v879
      %v950 = vpack.c.b16 %v894, %v887
      %v951 = vpack.c.b16 %v895, %v888
      %v952 = vpack.c.b16 %v896, %v889
      %v953 = vpack.c.b16 %v897, %v890
      %v954 = vpack.c.b16 %v898, %v891
      %v955 = vpack.c.b16 %v899, %v892
      %v956 = vpack.c.b16 %v900, %v893
      %1013 = vmatprep.subr.bf16.mxu0 %v951
      %1014 = vmatpush1.bf16.msra.mxu0 %v950
      %1015 = vmatprep.subr.bf16.mxu0 %v944
      %1016 = vmatpush1.bf16.msra.mxu0 %v943
      %1017 = vmatprep.subr.bf16.mxu0 %v937
      %1018 = vmatpush1.bf16.msra.mxu0 %v936
      %1019 = vmatprep.subr.bf16.mxu0 %v930
      %1020 = vmatpush1.bf16.msra.mxu0 %v929
      %1021 = vmatprep.subr.bf16.mxu0 %v923
      %1022 = vmatpush1.bf16.msra.mxu0 %v922
      %1023 = vmatprep.subr.bf16.mxu0 %v916
      %1024 = vmatpush1.bf16.msra.mxu0 %v915
      %1025 = vmatprep.subr.bf16.mxu0 %v909
      %1026 = vmatpush1.bf16.msra.mxu0 %v908
      %1027 = vmatprep.subr.bf16.mxu0 %v902
      %1028 = vmatpush1.bf16.msra.mxu0 %v901
      %1029 = vmatprep.subr.bf16.mxu0 0
      %1030 = vmatpush2.bf16.msra.mxu0 0
      %1031 = vmatprep.subr.bf16.mxu0 0
      %1032 = vmatpush2.bf16.msra.mxu0 0
      %1033 = vmatprep.subr.bf16.mxu0 0
      %1034 = vmatpush2.bf16.msra.mxu0 0
      %1035 = vmatprep.subr.bf16.mxu0 0
      %1036 = vmatpush2.bf16.msra.mxu0 0
      %1037 = vmatprep.subr.bf16.mxu0 0
      %1038 = vmatpush2.bf16.msra.mxu0 0
      %1039 = vmatprep.subr.bf16.mxu0 0
      %1040 = vmatpush2.bf16.msra.mxu0 0
      %1041 = vmatprep.subr.bf16.mxu0 0
      %1042 = vmatpush2.bf16.msra.mxu0 0
      %1043 = vmatprep.subr.bf16.mxu0 0
      %1044 = vmatpush2.bf16.msra.mxu0 0
      %1045 = vmatprep.mubr.bf16.mxu0 0
      %1046 = vmatmul.mubr.bf16.gmra.mxu0 %v608
      %v1047 = vpop.f32.mrf.mxu0
      %v1048 = vadd.f32 %v693, %v1047
      %v1049 = vpop.f32.mrf.mxu0
      %v1050 = vadd.f32 %v697, %v1049
      %v1051 = vpop.f32.mrf.mxu0
      %v1052 = vadd.f32 %v693, %v1051
      %v1053 = vpop.f32.mrf.mxu0
      %v1054 = vadd.f32 %v697, %v1053
      %1055 = vmatprep.mubr.bf16.mxu0 0
      %1056 = vmatmul.mubr.bf16.gmra.mxu0 %v609
      %v1057 = vpop.f32.mrf.mxu0
      %v1058 = vadd.f32 %v693, %v1057
      %v1059 = vpop.f32.mrf.mxu0
      %v1060 = vadd.f32 %v697, %v1059
      %v1061 = vpop.f32.mrf.mxu0
      %v1062 = vadd.f32 %v693, %v1061
      %v1063 = vpop.f32.mrf.mxu0
      %v1064 = vadd.f32 %v697, %v1063
      %1065 = vmatprep.mubr.bf16.mxu0 0
      %1066 = vmatmul.mubr.bf16.gmra.mxu0 %v610
      %v1067 = vpop.f32.mrf.mxu0
      %v1068 = vadd.f32 %v693, %v1067
      %v1069 = vpop.f32.mrf.mxu0
      %v1070 = vadd.f32 %v697, %v1069
      %v1071 = vpop.f32.mrf.mxu0
      %v1072 = vadd.f32 %v693, %v1071
      %v1073 = vpop.f32.mrf.mxu0
      %v1074 = vadd.f32 %v697, %v1073
      %1075 = vmatprep.mubr.bf16.mxu0 0
      %1076 = vmatmul.mubr.bf16.gmra.mxu0 %v611
      %v1077 = vpop.f32.mrf.mxu0
      %v1078 = vadd.f32 %v693, %v1077
      %v1079 = vpop.f32.mrf.mxu0
      %v1080 = vadd.f32 %v697, %v1079
      %v1081 = vpop.f32.mrf.mxu0
      %v1082 = vadd.f32 %v693, %v1081
      %v1083 = vpop.f32.mrf.mxu0
      %v1084 = vadd.f32 %v697, %v1083
      %1085 = vmatprep.mubr.bf16.mxu0 0
      %1086 = vmatmul.mubr.bf16.gmra.mxu0 %v612
      %v1087 = vpop.f32.mrf.mxu0
      %v1088 = vadd.f32 %v693, %v1087
      %v1089 = vpop.f32.mrf.mxu0
      %v1090 = vadd.f32 %v697, %v1089
      %v1091 = vpop.f32.mrf.mxu0
      %v1092 = vadd.f32 %v693, %v1091
      %v1093 = vpop.f32.mrf.mxu0
      %v1094 = vadd.f32 %v697, %v1093
      %1095 = vmatprep.mubr.bf16.mxu0 0
      %1096 = vmatmul.mubr.bf16.gmra.mxu0 %v613
      %v1097 = vpop.f32.mrf.mxu0
      %v1098 = vadd.f32 %v693, %v1097
      %v1099 = vpop.f32.mrf.mxu0
      %v1100 = vadd.f32 %v697, %v1099
      %v1101 = vpop.f32.mrf.mxu0
      %v1102 = vadd.f32 %v693, %v1101
      %v1103 = vpop.f32.mrf.mxu0
      %v1104 = vadd.f32 %v697, %v1103
      %1105 = vmatprep.mubr.bf16.mxu0 0
      %1106 = vmatmul.mubr.bf16.gmra.mxu0 %v614
      %v1107 = vpop.f32.mrf.mxu0
      %v1108 = vadd.f32 %v693, %v1107
      %v1109 = vpop.f32.mrf.mxu0
      %v1110 = vadd.f32 %v697, %v1109
      %v1111 = vpop.f32.mrf.mxu0
      %v1112 = vadd.f32 %v693, %v1111
      %v1113 = vpop.f32.mrf.mxu0
      %v1114 = vadd.f32 %v697, %v1113
      %1115 = vmatprep.mubr.bf16.mxu0 0
      %1116 = vmatmul.mubr.bf16.gmra.mxu0 %v615
      %v1117 = vpop.f32.mrf.mxu0
      %v1118 = vadd.f32 %v693, %v1117
      %v1119 = vpop.f32.mrf.mxu0
      %v1120 = vadd.f32 %v697, %v1119
      %v1121 = vpop.f32.mrf.mxu0
      %v1122 = vadd.f32 %v693, %v1121
      %v1123 = vpop.f32.mrf.mxu0
      %v1124 = vadd.f32 %v697, %v1123
      %1125 = vmatprep.mubr.bf16.mxu0 0
      %1126 = vmatmul.mubr.bf16.gmra.mxu0 %v616
      %v1127 = vpop.f32.mrf.mxu0
      %v1128 = vadd.f32 %v693, %v1127
      %v1129 = vpop.f32.mrf.mxu0
      %v1130 = vadd.f32 %v697, %v1129
      %v1131 = vpop.f32.mrf.mxu0
      %v1132 = vadd.f32 %v693, %v1131
      %v1133 = vpop.f32.mrf.mxu0
      %v1134 = vadd.f32 %v697, %v1133
      %1135 = vmatprep.mubr.bf16.mxu0 0
      %1136 = vmatmul.mubr.bf16.gmra.mxu0 %v617
      %v1137 = vpop.f32.mrf.mxu0
      %v1138 = vadd.f32 %v693, %v1137
      %v1139 = vpop.f32.mrf.mxu0
      %v1140 = vadd.f32 %v697, %v1139
      %v1141 = vpop.f32.mrf.mxu0
      %v1142 = vadd.f32 %v693, %v1141
      %v1143 = vpop.f32.mrf.mxu0
      %v1144 = vadd.f32 %v697, %v1143
      %1145 = vmatprep.mubr.bf16.mxu0 0
      %1146 = vmatmul.mubr.bf16.gmra.mxu0 %v618
      %v1147 = vpop.f32.mrf.mxu0
      %v1148 = vadd.f32 %v693, %v1147
      %v1149 = vpop.f32.mrf.mxu0
      %v1150 = vadd.f32 %v697, %v1149
      %v1151 = vpop.f32.mrf.mxu0
      %v1152 = vadd.f32 %v693, %v1151
      %v1153 = vpop.f32.mrf.mxu0
      %v1154 = vadd.f32 %v697, %v1153
      %1155 = vmatprep.mubr.bf16.mxu0 0
      %1156 = vmatmul.mubr.bf16.gmra.mxu0 %v619
      %v1157 = vpop.f32.mrf.mxu0
      %v1158 = vadd.f32 %v693, %v1157
      %v1159 = vpop.f32.mrf.mxu0
      %v1160 = vadd.f32 %v697, %v1159
      %v1161 = vpop.f32.mrf.mxu0
      %v1162 = vadd.f32 %v693, %v1161
      %v1163 = vpop.f32.mrf.mxu0
      %v1164 = vadd.f32 %v697, %v1163
      %1165 = vmatprep.mubr.bf16.mxu0 0
      %1166 = vmatmul.mubr.bf16.gmra.mxu0 %v620
      %v1167 = vpop.f32.mrf.mxu0
      %v1168 = vadd.f32 %v693, %v1167
      %v1169 = vpop.f32.mrf.mxu0
      %v1170 = vadd.f32 %v697, %v1169
      %v1171 = vpop.f32.mrf.mxu0
      %v1172 = vadd.f32 %v693, %v1171
      %v1173 = vpop.f32.mrf.mxu0
      %v1174 = vadd.f32 %v697, %v1173
      %1175 = vmatprep.mubr.bf16.mxu0 0
      %1176 = vmatmul.mubr.bf16.gmra.mxu0 %v621
      %v1177 = vpop.f32.mrf.mxu0
      %v1178 = vadd.f32 %v693, %v1177
      %v1179 = vpop.f32.mrf.mxu0
      %v1180 = vadd.f32 %v697, %v1179
      %v1181 = vpop.f32.mrf.mxu0
      %v1182 = vadd.f32 %v693, %v1181
      %v1183 = vpop.f32.mrf.mxu0
      %v1184 = vadd.f32 %v697, %v1183
      %1185 = vmatprep.mubr.bf16.mxu0 0
      %1186 = vmatmul.mubr.bf16.gmra.mxu0 %v622
      %v1187 = vpop.f32.mrf.mxu0
      %v1188 = vadd.f32 %v693, %v1187
      %v1189 = vpop.f32.mrf.mxu0
      %v1190 = vadd.f32 %v697, %v1189
      %v1191 = vpop.f32.mrf.mxu0
      %v1192 = vadd.f32 %v693, %v1191
      %v1193 = vpop.f32.mrf.mxu0
      %v1194 = vadd.f32 %v697, %v1193
      %1195 = vmatprep.mubr.bf16.mxu0 0
      %1196 = vmatmul.mubr.bf16.gmra.mxu0 %v623
      %v1197 = vpop.f32.mrf.mxu0
      %v1198 = vadd.f32 %v693, %v1197
      %v1199 = vpop.f32.mrf.mxu0
      %v1200 = vadd.f32 %v697, %v1199
      %v1201 = vpop.f32.mrf.mxu0
      %v1202 = vadd.f32 %v693, %v1201
      %v1203 = vpop.f32.mrf.mxu0
      %v1204 = vadd.f32 %v697, %v1203
      %1205 = vdwg.mxu0
      %1206 = vmatprep.subr.bf16.mxu0 %v953
      %1207 = vmatpush1.bf16.msra.mxu0 %v952
      %1208 = vmatprep.subr.bf16.mxu0 %v946
      %1209 = vmatpush1.bf16.msra.mxu0 %v945
      %1210 = vmatprep.subr.bf16.mxu0 %v939
      %1211 = vmatpush1.bf16.msra.mxu0 %v938
      %1212 = vmatprep.subr.bf16.mxu0 %v932
      %1213 = vmatpush1.bf16.msra.mxu0 %v931
      %1214 = vmatprep.subr.bf16.mxu0 %v925
      %1215 = vmatpush1.bf16.msra.mxu0 %v924
      %1216 = vmatprep.subr.bf16.mxu0 %v918
      %1217 = vmatpush1.bf16.msra.mxu0 %v917
      %1218 = vmatprep.subr.bf16.mxu0 %v911
      %1219 = vmatpush1.bf16.msra.mxu0 %v910
      %1220 = vmatprep.subr.bf16.mxu0 %v904
      %1221 = vmatpush1.bf16.msra.mxu0 %v903
      %1222 = vmatprep.subr.bf16.mxu0 0
      %1223 = vmatpush2.bf16.msra.mxu0 0
      %1224 = vmatprep.subr.bf16.mxu0 0
      %1225 = vmatpush2.bf16.msra.mxu0 0
      %1226 = vmatprep.subr.bf16.mxu0 0
      %1227 = vmatpush2.bf16.msra.mxu0 0
      %1228 = vmatprep.subr.bf16.mxu0 0
      %1229 = vmatpush2.bf16.msra.mxu0 0
      %1230 = vmatprep.subr.bf16.mxu0 0
      %1231 = vmatpush2.bf16.msra.mxu0 0
      %1232 = vmatprep.subr.bf16.mxu0 0
      %1233 = vmatpush2.bf16.msra.mxu0 0
      %1234 = vmatprep.subr.bf16.mxu0 0
      %1235 = vmatpush2.bf16.msra.mxu0 0
      %1236 = vmatprep.subr.bf16.mxu0 0
      %1237 = vmatpush2.bf16.msra.mxu0 0
      %1238 = vmatprep.mubr.bf16.mxu0 0
      %1239 = vmatmul.mubr.bf16.gmra.mxu0 %v608
      %v1240 = vpop.f32.mrf.mxu0
      %v1241 = vadd.f32 %v701, %v1240
      %v1242 = vpop.f32.mrf.mxu0
      %v1243 = vadd.f32 %v705, %v1242
      %v1244 = vpop.f32.mrf.mxu0
      %v1245 = vadd.f32 %v701, %v1244
      %v1246 = vpop.f32.mrf.mxu0
      %v1247 = vadd.f32 %v705, %v1246
      %1248 = vmatprep.mubr.bf16.mxu0 0
      %1249 = vmatmul.mubr.bf16.gmra.mxu0 %v609
      %v1250 = vpop.f32.mrf.mxu0
      %v1251 = vadd.f32 %v701, %v1250
      %v1252 = vpop.f32.mrf.mxu0
      %v1253 = vadd.f32 %v705, %v1252
      %v1254 = vpop.f32.mrf.mxu0
      %v1255 = vadd.f32 %v701, %v1254
      %v1256 = vpop.f32.mrf.mxu0
      %v1257 = vadd.f32 %v705, %v1256
      %1258 = vmatprep.mubr.bf16.mxu0 0
      %1259 = vmatmul.mubr.bf16.gmra.mxu0 %v610
      %v1260 = vpop.f32.mrf.mxu0
      %v1261 = vadd.f32 %v701, %v1260
      %v1262 = vpop.f32.mrf.mxu0
      %v1263 = vadd.f32 %v705, %v1262
      %v1264 = vpop.f32.mrf.mxu0
      %v1265 = vadd.f32 %v701, %v1264
      %v1266 = vpop.f32.mrf.mxu0
      %v1267 = vadd.f32 %v705, %v1266
      %1268 = vmatprep.mubr.bf16.mxu0 0
      %1269 = vmatmul.mubr.bf16.gmra.mxu0 %v611
      %v1270 = vpop.f32.mrf.mxu0
      %v1271 = vadd.f32 %v701, %v1270
      %v1272 = vpop.f32.mrf.mxu0
      %v1273 = vadd.f32 %v705, %v1272
      %v1274 = vpop.f32.mrf.mxu0
      %v1275 = vadd.f32 %v701, %v1274
      %v1276 = vpop.f32.mrf.mxu0
      %v1277 = vadd.f32 %v705, %v1276
      %1278 = vmatprep.mubr.bf16.mxu0 0
      %1279 = vmatmul.mubr.bf16.gmra.mxu0 %v612
      %v1280 = vpop.f32.mrf.mxu0
      %v1281 = vadd.f32 %v701, %v1280
      %v1282 = vpop.f32.mrf.mxu0
      %v1283 = vadd.f32 %v705, %v1282
      %v1284 = vpop.f32.mrf.mxu0
      %v1285 = vadd.f32 %v701, %v1284
      %v1286 = vpop.f32.mrf.mxu0
      %v1287 = vadd.f32 %v705, %v1286
      %1288 = vmatprep.mubr.bf16.mxu0 0
      %1289 = vmatmul.mubr.bf16.gmra.mxu0 %v613
      %v1290 = vpop.f32.mrf.mxu0
      %v1291 = vadd.f32 %v701, %v1290
      %v1292 = vpop.f32.mrf.mxu0
      %v1293 = vadd.f32 %v705, %v1292
      %v1294 = vpop.f32.mrf.mxu0
      %v1295 = vadd.f32 %v701, %v1294
      %v1296 = vpop.f32.mrf.mxu0
      %v1297 = vadd.f32 %v705, %v1296
      %1298 = vmatprep.mubr.bf16.mxu0 0
      %1299 = vmatmul.mubr.bf16.gmra.mxu0 %v614
      %v1300 = vpop.f32.mrf.mxu0
      %v1301 = vadd.f32 %v701, %v1300
      %v1302 = vpop.f32.mrf.mxu0
      %v1303 = vadd.f32 %v705, %v1302
      %v1304 = vpop.f32.mrf.mxu0
      %v1305 = vadd.f32 %v701, %v1304
      %v1306 = vpop.f32.mrf.mxu0
      %v1307 = vadd.f32 %v705, %v1306
      %1308 = vmatprep.mubr.bf16.mxu0 0
      %1309 = vmatmul.mubr.bf16.gmra.mxu0 %v615
      %v1310 = vpop.f32.mrf.mxu0
      %v1311 = vadd.f32 %v701, %v1310
      %v1312 = vpop.f32.mrf.mxu0
      %v1313 = vadd.f32 %v705, %v1312
      %v1314 = vpop.f32.mrf.mxu0
      %v1315 = vadd.f32 %v701, %v1314
      %v1316 = vpop.f32.mrf.mxu0
      %v1317 = vadd.f32 %v705, %v1316
      %1318 = vmatprep.mubr.bf16.mxu0 0
      %1319 = vmatmul.mubr.bf16.gmra.mxu0 %v616
      %v1320 = vpop.f32.mrf.mxu0
      %v1321 = vadd.f32 %v701, %v1320
      %v1322 = vpop.f32.mrf.mxu0
      %v1323 = vadd.f32 %v705, %v1322
      %v1324 = vpop.f32.mrf.mxu0
      %v1325 = vadd.f32 %v701, %v1324
      %v1326 = vpop.f32.mrf.mxu0
      %v1327 = vadd.f32 %v705, %v1326
      %1328 = vmatprep.mubr.bf16.mxu0 0
      %1329 = vmatmul.mubr.bf16.gmra.mxu0 %v617
      %v1330 = vpop.f32.mrf.mxu0
      %v1331 = vadd.f32 %v701, %v1330
      %v1332 = vpop.f32.mrf.mxu0
      %v1333 = vadd.f32 %v705, %v1332
      %v1334 = vpop.f32.mrf.mxu0
      %v1335 = vadd.f32 %v701, %v1334
      %v1336 = vpop.f32.mrf.mxu0
      %v1337 = vadd.f32 %v705, %v1336
      %1338 = vmatprep.mubr.bf16.mxu0 0
      %1339 = vmatmul.mubr.bf16.gmra.mxu0 %v618
      %v1340 = vpop.f32.mrf.mxu0
      %v1341 = vadd.f32 %v701, %v1340
      %v1342 = vpop.f32.mrf.mxu0
      %v1343 = vadd.f32 %v705, %v1342
      %v1344 = vpop.f32.mrf.mxu0
      %v1345 = vadd.f32 %v701, %v1344
      %v1346 = vpop.f32.mrf.mxu0
      %v1347 = vadd.f32 %v705, %v1346
      %1348 = vmatprep.mubr.bf16.mxu0 0
      %1349 = vmatmul.mubr.bf16.gmra.mxu0 %v619
      %v1350 = vpop.f32.mrf.mxu0
      %v1351 = vadd.f32 %v701, %v1350
      %v1352 = vpop.f32.mrf.mxu0
      %v1353 = vadd.f32 %v705, %v1352
      %v1354 = vpop.f32.mrf.mxu0
      %v1355 = vadd.f32 %v701, %v1354
      %v1356 = vpop.f32.mrf.mxu0
      %v1357 = vadd.f32 %v705, %v1356
      %1358 = vmatprep.mubr.bf16.mxu0 0
      %1359 = vmatmul.mubr.bf16.gmra.mxu0 %v620
      %v1360 = vpop.f32.mrf.mxu0
      %v1361 = vadd.f32 %v701, %v1360
      %v1362 = vpop.f32.mrf.mxu0
      %v1363 = vadd.f32 %v705, %v1362
      %v1364 = vpop.f32.mrf.mxu0
      %v1365 = vadd.f32 %v701, %v1364
      %v1366 = vpop.f32.mrf.mxu0
      %v1367 = vadd.f32 %v705, %v1366
      %1368 = vmatprep.mubr.bf16.mxu0 0
      %1369 = vmatmul.mubr.bf16.gmra.mxu0 %v621
      %v1370 = vpop.f32.mrf.mxu0
      %v1371 = vadd.f32 %v701, %v1370
      %v1372 = vpop.f32.mrf.mxu0
      %v1373 = vadd.f32 %v705, %v1372
      %v1374 = vpop.f32.mrf.mxu0
      %v1375 = vadd.f32 %v701, %v1374
      %v1376 = vpop.f32.mrf.mxu0
      %v1377 = vadd.f32 %v705, %v1376
      %1378 = vmatprep.mubr.bf16.mxu0 0
      %1379 = vmatmul.mubr.bf16.gmra.mxu0 %v622
      %v1380 = vpop.f32.mrf.mxu0
      %v1381 = vadd.f32 %v701, %v1380
      %v1382 = vpop.f32.mrf.mxu0
      %v1383 = vadd.f32 %v705, %v1382
      %v1384 = vpop.f32.mrf.mxu0
      %v1385 = vadd.f32 %v701, %v1384
      %v1386 = vpop.f32.mrf.mxu0
      %v1387 = vadd.f32 %v705, %v1386
      %1388 = vmatprep.mubr.bf16.mxu0 0
      %1389 = vmatmul.mubr.bf16.gmra.mxu0 %v623
      %v1390 = vpop.f32.mrf.mxu0
      %v1391 = vadd.f32 %v701, %v1390
      %v1392 = vpop.f32.mrf.mxu0
      %v1393 = vadd.f32 %v705, %v1392
      %v1394 = vpop.f32.mrf.mxu0
      %v1395 = vadd.f32 %v701, %v1394
      %v1396 = vpop.f32.mrf.mxu0
      %v1397 = vadd.f32 %v705, %v1396
      %1398 = vdwg.mxu0
      %1399 = vmatprep.subr.bf16.mxu0 %v955
      %1400 = vmatpush1.bf16.msra.mxu0 %v954
      %1401 = vmatprep.subr.bf16.mxu0 %v948
      %1402 = vmatpush1.bf16.msra.mxu0 %v947
      %1403 = vmatprep.subr.bf16.mxu0 %v941
      %1404 = vmatpush1.bf16.msra.mxu0 %v940
      %1405 = vmatprep.subr.bf16.mxu0 %v934
      %1406 = vmatpush1.bf16.msra.mxu0 %v933
      %1407 = vmatprep.subr.bf16.mxu0 %v927
      %1408 = vmatpush1.bf16.msra.mxu0 %v926
      %1409 = vmatprep.subr.bf16.mxu0 %v920
      %1410 = vmatpush1.bf16.msra.mxu0 %v919
      %1411 = vmatprep.subr.bf16.mxu0 %v913
      %1412 = vmatpush1.bf16.msra.mxu0 %v912
      %1413 = vmatprep.subr.bf16.mxu0 %v906
      %1414 = vmatpush1.bf16.msra.mxu0 %v905
      %1415 = vmatprep.subr.bf16.mxu0 0
      %1416 = vmatpush2.bf16.msra.mxu0 0
      %1417 = vmatprep.subr.bf16.mxu0 0
      %1418 = vmatpush2.bf16.msra.mxu0 0
      %1419 = vmatprep.subr.bf16.mxu0 0
      %1420 = vmatpush2.bf16.msra.mxu0 0
      %1421 = vmatprep.subr.bf16.mxu0 0
      %1422 = vmatpush2.bf16.msra.mxu0 0
      %1423 = vmatprep.subr.bf16.mxu0 0
      %1424 = vmatpush2.bf16.msra.mxu0 0
      %1425 = vmatprep.subr.bf16.mxu0 0
      %1426 = vmatpush2.bf16.msra.mxu0 0
      %1427 = vmatprep.subr.bf16.mxu0 0
      %1428 = vmatpush2.bf16.msra.mxu0 0
      %1429 = vmatprep.subr.bf16.mxu0 0
      %1430 = vmatpush2.bf16.msra.mxu0 0
      %1431 = vmatprep.mubr.bf16.mxu0 0
      %1432 = vmatmul.mubr.bf16.gmra.mxu0 %v608
      %v1433 = vpop.f32.mrf.mxu0
      %v1434 = vadd.f32 %v709, %v1433
      %v1435 = vpop.f32.mrf.mxu0
      %v1436 = vadd.f32 %v713, %v1435
      %v1437 = vpop.f32.mrf.mxu0
      %v1438 = vadd.f32 %v709, %v1437
      %v1439 = vpop.f32.mrf.mxu0
      %v1440 = vadd.f32 %v713, %v1439
      %1441 = vmatprep.mubr.bf16.mxu0 0
      %1442 = vmatmul.mubr.bf16.gmra.mxu0 %v609
      %v1443 = vpop.f32.mrf.mxu0
      %v1444 = vadd.f32 %v709, %v1443
      %v1445 = vpop.f32.mrf.mxu0
      %v1446 = vadd.f32 %v713, %v1445
      %v1447 = vpop.f32.mrf.mxu0
      %v1448 = vadd.f32 %v709, %v1447
      %v1449 = vpop.f32.mrf.mxu0
      %v1450 = vadd.f32 %v713, %v1449
      %1451 = vmatprep.mubr.bf16.mxu0 0
      %1452 = vmatmul.mubr.bf16.gmra.mxu0 %v610
      %v1453 = vpop.f32.mrf.mxu0
      %v1454 = vadd.f32 %v709, %v1453
      %v1455 = vpop.f32.mrf.mxu0
      %v1456 = vadd.f32 %v713, %v1455
      %v1457 = vpop.f32.mrf.mxu0
      %v1458 = vadd.f32 %v709, %v1457
      %v1459 = vpop.f32.mrf.mxu0
      %v1460 = vadd.f32 %v713, %v1459
      %1461 = vmatprep.mubr.bf16.mxu0 0
      %1462 = vmatmul.mubr.bf16.gmra.mxu0 %v611
      %v1463 = vpop.f32.mrf.mxu0
      %v1464 = vadd.f32 %v709, %v1463
      %v1465 = vpop.f32.mrf.mxu0
      %v1466 = vadd.f32 %v713, %v1465
      %v1467 = vpop.f32.mrf.mxu0
      %v1468 = vadd.f32 %v709, %v1467
      %v1469 = vpop.f32.mrf.mxu0
      %v1470 = vadd.f32 %v713, %v1469
      %1471 = vmatprep.mubr.bf16.mxu0 0
      %1472 = vmatmul.mubr.bf16.gmra.mxu0 %v612
      %v1473 = vpop.f32.mrf.mxu0
      %v1474 = vadd.f32 %v709, %v1473
      %v1475 = vpop.f32.mrf.mxu0
      %v1476 = vadd.f32 %v713, %v1475
      %v1477 = vpop.f32.mrf.mxu0
      %v1478 = vadd.f32 %v709, %v1477
      %v1479 = vpop.f32.mrf.mxu0
      %v1480 = vadd.f32 %v713, %v1479
      %1481 = vmatprep.mubr.bf16.mxu0 0
      %1482 = vmatmul.mubr.bf16.gmra.mxu0 %v613
      %v1483 = vpop.f32.mrf.mxu0
      %v1484 = vadd.f32 %v709, %v1483
      %v1485 = vpop.f32.mrf.mxu0
      %v1486 = vadd.f32 %v713, %v1485
      %v1487 = vpop.f32.mrf.mxu0
      %v1488 = vadd.f32 %v709, %v1487
      %v1489 = vpop.f32.mrf.mxu0
      %v1490 = vadd.f32 %v713, %v1489
      %1491 = vmatprep.mubr.bf16.mxu0 0
      %1492 = vmatmul.mubr.bf16.gmra.mxu0 %v614
      %v1493 = vpop.f32.mrf.mxu0
      %v1494 = vadd.f32 %v709, %v1493
      %v1495 = vpop.f32.mrf.mxu0
      %v1496 = vadd.f32 %v713, %v1495
      %v1497 = vpop.f32.mrf.mxu0
      %v1498 = vadd.f32 %v709, %v1497
      %v1499 = vpop.f32.mrf.mxu0
      %v1500 = vadd.f32 %v713, %v1499
      %1501 = vmatprep.mubr.bf16.mxu0 0
      %1502 = vmatmul.mubr.bf16.gmra.mxu0 %v615
      %v1503 = vpop.f32.mrf.mxu0
      %v1504 = vadd.f32 %v709, %v1503
      %v1505 = vpop.f32.mrf.mxu0
      %v1506 = vadd.f32 %v713, %v1505
      %v1507 = vpop.f32.mrf.mxu0
      %v1508 = vadd.f32 %v709, %v1507
      %v1509 = vpop.f32.mrf.mxu0
      %v1510 = vadd.f32 %v713, %v1509
      %1511 = vmatprep.mubr.bf16.mxu0 0
      %1512 = vmatmul.mubr.bf16.gmra.mxu0 %v616
      %v1513 = vpop.f32.mrf.mxu0
      %v1514 = vadd.f32 %v709, %v1513
      %v1515 = vpop.f32.mrf.mxu0
      %v1516 = vadd.f32 %v713, %v1515
      %v1517 = vpop.f32.mrf.mxu0
      %v1518 = vadd.f32 %v709, %v1517
      %v1519 = vpop.f32.mrf.mxu0
      %v1520 = vadd.f32 %v713, %v1519
      %1521 = vmatprep.mubr.bf16.mxu0 0
      %1522 = vmatmul.mubr.bf16.gmra.mxu0 %v617
      %v1523 = vpop.f32.mrf.mxu0
      %v1524 = vadd.f32 %v709, %v1523
      %v1525 = vpop.f32.mrf.mxu0
      %v1526 = vadd.f32 %v713, %v1525
      %v1527 = vpop.f32.mrf.mxu0
      %v1528 = vadd.f32 %v709, %v1527
      %v1529 = vpop.f32.mrf.mxu0
      %v1530 = vadd.f32 %v713, %v1529
      %1531 = vmatprep.mubr.bf16.mxu0 0
      %1532 = vmatmul.mubr.bf16.gmra.mxu0 %v618
      %v1533 = vpop.f32.mrf.mxu0
      %v1534 = vadd.f32 %v709, %v1533
      %v1535 = vpop.f32.mrf.mxu0
      %v1536 = vadd.f32 %v713, %v1535
      %v1537 = vpop.f32.mrf.mxu0
      %v1538 = vadd.f32 %v709, %v1537
      %v1539 = vpop.f32.mrf.mxu0
      %v1540 = vadd.f32 %v713, %v1539
      %1541 = vmatprep.mubr.bf16.mxu0 0
      %1542 = vmatmul.mubr.bf16.gmra.mxu0 %v619
      %v1543 = vpop.f32.mrf.mxu0
      %v1544 = vadd.f32 %v709, %v1543
      %v1545 = vpop.f32.mrf.mxu0
      %v1546 = vadd.f32 %v713, %v1545
      %v1547 = vpop.f32.mrf.mxu0
      %v1548 = vadd.f32 %v709, %v1547
      %v1549 = vpop.f32.mrf.mxu0
      %v1550 = vadd.f32 %v713, %v1549
      %1551 = vmatprep.mubr.bf16.mxu0 0
      %1552 = vmatmul.mubr.bf16.gmra.mxu0 %v620
      %v1553 = vpop.f32.mrf.mxu0
      %v1554 = vadd.f32 %v709, %v1553
      %v1555 = vpop.f32.mrf.mxu0
      %v1556 = vadd.f32 %v713, %v1555
      %v1557 = vpop.f32.mrf.mxu0
      %v1558 = vadd.f32 %v709, %v1557
      %v1559 = vpop.f32.mrf.mxu0
      %v1560 = vadd.f32 %v713, %v1559
      %1561 = vmatprep.mubr.bf16.mxu0 0
      %1562 = vmatmul.mubr.bf16.gmra.mxu0 %v621
      %v1563 = vpop.f32.mrf.mxu0
      %v1564 = vadd.f32 %v709, %v1563
      %v1565 = vpop.f32.mrf.mxu0
      %v1566 = vadd.f32 %v713, %v1565
      %v1567 = vpop.f32.mrf.mxu0
      %v1568 = vadd.f32 %v709, %v1567
      %v1569 = vpop.f32.mrf.mxu0
      %v1570 = vadd.f32 %v713, %v1569
      %1571 = vmatprep.mubr.bf16.mxu0 0
      %1572 = vmatmul.mubr.bf16.gmra.mxu0 %v622
      %v1573 = vpop.f32.mrf.mxu0
      %v1574 = vadd.f32 %v709, %v1573
      %v1575 = vpop.f32.mrf.mxu0
      %v1576 = vadd.f32 %v713, %v1575
      %v1577 = vpop.f32.mrf.mxu0
      %v1578 = vadd.f32 %v709, %v1577
      %v1579 = vpop.f32.mrf.mxu0
      %v1580 = vadd.f32 %v713, %v1579
      %1581 = vmatprep.mubr.bf16.mxu0 0
      %1582 = vmatmul.mubr.bf16.gmra.mxu0 %v623
      %v1583 = vpop.f32.mrf.mxu0
      %v1584 = vadd.f32 %v709, %v1583
      %v1585 = vpop.f32.mrf.mxu0
      %v1586 = vadd.f32 %v713, %v1585
      %v1587 = vpop.f32.mrf.mxu0
      %v1588 = vadd.f32 %v709, %v1587
      %v1589 = vpop.f32.mrf.mxu0
      %v1590 = vadd.f32 %v713, %v1589
      %1591 = vdwg.mxu0
      %1592 = vmatprep.subr.bf16.mxu0 0
      %1593 = vmatpush1.bf16.msra.mxu0 %v956
      %1594 = vmatprep.subr.bf16.mxu0 0
      %1595 = vmatpush1.bf16.msra.mxu0 %v949
      %1596 = vmatprep.subr.bf16.mxu0 0
      %1597 = vmatpush1.bf16.msra.mxu0 %v942
      %1598 = vmatprep.subr.bf16.mxu0 0
      %1599 = vmatpush1.bf16.msra.mxu0 %v935
      %1600 = vmatprep.subr.bf16.mxu0 0
      %1601 = vmatpush1.bf16.msra.mxu0 %v928
      %1602 = vmatprep.subr.bf16.mxu0 0
      %1603 = vmatpush1.bf16.msra.mxu0 %v921
      %1604 = vmatprep.subr.bf16.mxu0 0
      %1605 = vmatpush1.bf16.msra.mxu0 %v914
      %1606 = vmatprep.subr.bf16.mxu0 0
      %1607 = vmatpush1.bf16.msra.mxu0 %v907
      %1608 = vmatprep.subr.bf16.mxu0 0
      %1609 = vmatpush2.bf16.msra.mxu0 0
      %1610 = vmatprep.subr.bf16.mxu0 0
      %1611 = vmatpush2.bf16.msra.mxu0 0
      %1612 = vmatprep.subr.bf16.mxu0 0
      %1613 = vmatpush2.bf16.msra.mxu0 0
      %1614 = vmatprep.subr.bf16.mxu0 0
      %1615 = vmatpush2.bf16.msra.mxu0 0
      %1616 = vmatprep.subr.bf16.mxu0 0
      %1617 = vmatpush2.bf16.msra.mxu0 0
      %1618 = vmatprep.subr.bf16.mxu0 0
      %1619 = vmatpush2.bf16.msra.mxu0 0
      %1620 = vmatprep.subr.bf16.mxu0 0
      %1621 = vmatpush2.bf16.msra.mxu0 0
      %1622 = vmatprep.subr.bf16.mxu0 0
      %1623 = vmatpush2.bf16.msra.mxu0 0
      %1624 = vmatprep.mubr.bf16.mxu0 0
      %1625 = vmatmul.mubr.bf16.gmra.mxu0 %v608
      %v1626 = vpop.f32.mrf.mxu0
      %v1627 = vadd.f32 %v717, %v1626
      %v1628 = vpop.f32.mrf.mxu0
      %v1629 = vpop.f32.mrf.mxu0
      %v1630 = vadd.f32 %v717, %v1629
      %v1631 = vpop.f32.mrf.mxu0
      %1632 = vmatprep.mubr.bf16.mxu0 0
      %1633 = vmatmul.mubr.bf16.gmra.mxu0 %v609
      %v1634 = vpop.f32.mrf.mxu0
      %v1635 = vadd.f32 %v717, %v1634
      %v1636 = vpop.f32.mrf.mxu0
      %v1637 = vpop.f32.mrf.mxu0
      %v1638 = vadd.f32 %v717, %v1637
      %v1639 = vpop.f32.mrf.mxu0
      %1640 = vmatprep.mubr.bf16.mxu0 0
      %1641 = vmatmul.mubr.bf16.gmra.mxu0 %v610
      %v1642 = vpop.f32.mrf.mxu0
      %v1643 = vadd.f32 %v717, %v1642
      %v1644 = vpop.f32.mrf.mxu0
      %v1645 = vpop.f32.mrf.mxu0
      %v1646 = vadd.f32 %v717, %v1645
      %v1647 = vpop.f32.mrf.mxu0
      %1648 = vmatprep.mubr.bf16.mxu0 0
      %1649 = vmatmul.mubr.bf16.gmra.mxu0 %v611
      %v1650 = vpop.f32.mrf.mxu0
      %v1651 = vadd.f32 %v717, %v1650
      %v1652 = vpop.f32.mrf.mxu0
      %v1653 = vpop.f32.mrf.mxu0
      %v1654 = vadd.f32 %v717, %v1653
      %v1655 = vpop.f32.mrf.mxu0
      %1656 = vmatprep.mubr.bf16.mxu0 0
      %1657 = vmatmul.mubr.bf16.gmra.mxu0 %v612
      %v1658 = vpop.f32.mrf.mxu0
      %v1659 = vadd.f32 %v717, %v1658
      %v1660 = vpop.f32.mrf.mxu0
      %v1661 = vpop.f32.mrf.mxu0
      %v1662 = vadd.f32 %v717, %v1661
      %v1663 = vpop.f32.mrf.mxu0
      %1664 = vmatprep.mubr.bf16.mxu0 0
      %1665 = vmatmul.mubr.bf16.gmra.mxu0 %v613
      %v1666 = vpop.f32.mrf.mxu0
      %v1667 = vadd.f32 %v717, %v1666
      %v1668 = vpop.f32.mrf.mxu0
      %v1669 = vpop.f32.mrf.mxu0
      %v1670 = vadd.f32 %v717, %v1669
      %v1671 = vpop.f32.mrf.mxu0
      %1672 = vmatprep.mubr.bf16.mxu0 0
      %1673 = vmatmul.mubr.bf16.gmra.mxu0 %v614
      %v1674 = vpop.f32.mrf.mxu0
      %v1675 = vadd.f32 %v717, %v1674
      %v1676 = vpop.f32.mrf.mxu0
      %v1677 = vpop.f32.mrf.mxu0
      %v1678 = vadd.f32 %v717, %v1677
      %v1679 = vpop.f32.mrf.mxu0
      %1680 = vmatprep.mubr.bf16.mxu0 0
      %1681 = vmatmul.mubr.bf16.gmra.mxu0 %v615
      %v1682 = vpop.f32.mrf.mxu0
      %v1683 = vadd.f32 %v717, %v1682
      %v1684 = vpop.f32.mrf.mxu0
      %v1685 = vpop.f32.mrf.mxu0
      %v1686 = vadd.f32 %v717, %v1685
      %v1687 = vpop.f32.mrf.mxu0
      %1688 = vmatprep.mubr.bf16.mxu0 0
      %1689 = vmatmul.mubr.bf16.gmra.mxu0 %v616
      %v1690 = vpop.f32.mrf.mxu0
      %v1691 = vadd.f32 %v717, %v1690
      %v1692 = vpop.f32.mrf.mxu0
      %v1693 = vpop.f32.mrf.mxu0
      %v1694 = vadd.f32 %v717, %v1693
      %v1695 = vpop.f32.mrf.mxu0
      %1696 = vmatprep.mubr.bf16.mxu0 0
      %1697 = vmatmul.mubr.bf16.gmra.mxu0 %v617
      %v1698 = vpop.f32.mrf.mxu0
      %v1699 = vadd.f32 %v717, %v1698
      %v1700 = vpop.f32.mrf.mxu0
      %v1701 = vpop.f32.mrf.mxu0
      %v1702 = vadd.f32 %v717, %v1701
      %v1703 = vpop.f32.mrf.mxu0
      %1704 = vmatprep.mubr.bf16.mxu0 0
      %1705 = vmatmul.mubr.bf16.gmra.mxu0 %v618
      %v1706 = vpop.f32.mrf.mxu0
      %v1707 = vadd.f32 %v717, %v1706
      %v1708 = vpop.f32.mrf.mxu0
      %v1709 = vpop.f32.mrf.mxu0
      %v1710 = vadd.f32 %v717, %v1709
      %v1711 = vpop.f32.mrf.mxu0
      %1712 = vmatprep.mubr.bf16.mxu0 0
      %1713 = vmatmul.mubr.bf16.gmra.mxu0 %v619
      %v1714 = vpop.f32.mrf.mxu0
      %v1715 = vadd.f32 %v717, %v1714
      %v1716 = vpop.f32.mrf.mxu0
      %v1717 = vpop.f32.mrf.mxu0
      %v1718 = vadd.f32 %v717, %v1717
      %v1719 = vpop.f32.mrf.mxu0
      %1720 = vmatprep.mubr.bf16.mxu0 0
      %1721 = vmatmul.mubr.bf16.gmra.mxu0 %v620
      %v1722 = vpop.f32.mrf.mxu0
      %v1723 = vadd.f32 %v717, %v1722
      %v1724 = vpop.f32.mrf.mxu0
      %v1725 = vpop.f32.mrf.mxu0
      %v1726 = vadd.f32 %v717, %v1725
      %v1727 = vpop.f32.mrf.mxu0
      %1728 = vmatprep.mubr.bf16.mxu0 0
      %1729 = vmatmul.mubr.bf16.gmra.mxu0 %v621
      %v1730 = vpop.f32.mrf.mxu0
      %v1731 = vadd.f32 %v717, %v1730
      %v1732 = vpop.f32.mrf.mxu0
      %v1733 = vpop.f32.mrf.mxu0
      %v1734 = vadd.f32 %v717, %v1733
      %v1735 = vpop.f32.mrf.mxu0
      %1736 = vmatprep.mubr.bf16.mxu0 0
      %1737 = vmatmul.mubr.bf16.gmra.mxu0 %v622
      %v1738 = vpop.f32.mrf.mxu0
      %v1739 = vadd.f32 %v717, %v1738
      %v1740 = vpop.f32.mrf.mxu0
      %v1741 = vpop.f32.mrf.mxu0
      %v1742 = vadd.f32 %v717, %v1741
      %v1743 = vpop.f32.mrf.mxu0
      %1744 = vmatprep.mubr.bf16.mxu0 0
      %1745 = vmatmul.mubr.bf16.gmra.mxu0 %v623
      %v1746 = vpop.f32.mrf.mxu0
      %v1747 = vadd.f32 %v717, %v1746
      %v1748 = vpop.f32.mrf.mxu0
      %v1749 = vpop.f32.mrf.mxu0
      %v1750 = vadd.f32 %v717, %v1749
      %v1751 = vpop.f32.mrf.mxu0
      %1752 = vdwg.mxu0
      %v1753 = vmul.f32 %v1048, 0.5
      %v1754 = vmul.f32 %v1050, 0.5
      %v1755 = vmul.f32 %v1241, 0.5
      %v1756 = vmul.f32 %v1243, 0.5
      %v1757 = vmul.f32 %v1434, 0.5
      %v1758 = vmul.f32 %v1436, 0.5
      %v1759 = vmul.f32 %v1627, 0.5
      %v1760 = vmul.f32 %v1052, 0.5
      %v1761 = vmul.f32 %v1054, 0.5
      %v1762 = vmul.f32 %v1245, 0.5
      %v1763 = vmul.f32 %v1247, 0.5
      %v1764 = vmul.f32 %v1438, 0.5
      %v1765 = vmul.f32 %v1440, 0.5
      %v1766 = vmul.f32 %v1630, 0.5
      %v1767 = vmul.f32 %v1058, 0.5
      %v1768 = vmul.f32 %v1060, 0.5
      %v1769 = vmul.f32 %v1251, 0.5
      %v1770 = vmul.f32 %v1253, 0.5
      %v1771 = vmul.f32 %v1444, 0.5
      %v1772 = vmul.f32 %v1446, 0.5
      %v1773 = vmul.f32 %v1635, 0.5
      %v1774 = vmul.f32 %v1062, 0.5
      %v1775 = vmul.f32 %v1064, 0.5
      %v1776 = vmul.f32 %v1255, 0.5
      %v1777 = vmul.f32 %v1257, 0.5
      %v1778 = vmul.f32 %v1448, 0.5
      %v1779 = vmul.f32 %v1450, 0.5
      %v1780 = vmul.f32 %v1638, 0.5
      %v1781 = vmul.f32 %v1068, 0.5
      %v1782 = vmul.f32 %v1070, 0.5
      %v1783 = vmul.f32 %v1261, 0.5
      %v1784 = vmul.f32 %v1263, 0.5
      %v1785 = vmul.f32 %v1454, 0.5
      %v1786 = vmul.f32 %v1456, 0.5
      %v1787 = vmul.f32 %v1643, 0.5
      %v1788 = vmul.f32 %v1072, 0.5
      %v1789 = vmul.f32 %v1074, 0.5
      %v1790 = vmul.f32 %v1265, 0.5
      %v1791 = vmul.f32 %v1267, 0.5
      %v1792 = vmul.f32 %v1458, 0.5
      %v1793 = vmul.f32 %v1460, 0.5
      %v1794 = vmul.f32 %v1646, 0.5
      %v1795 = vmul.f32 %v1078, 0.5
      %v1796 = vmul.f32 %v1080, 0.5
      %v1797 = vmul.f32 %v1271, 0.5
      %v1798 = vmul.f32 %v1273, 0.5
      %v1799 = vmul.f32 %v1464, 0.5
      %v1800 = vmul.f32 %v1466, 0.5
      %v1801 = vmul.f32 %v1651, 0.5
      %v1802 = vmul.f32 %v1082, 0.5
      %v1803 = vmul.f32 %v1084, 0.5
      %v1804 = vmul.f32 %v1275, 0.5
      %v1805 = vmul.f32 %v1277, 0.5
      %v1806 = vmul.f32 %v1468, 0.5
      %v1807 = vmul.f32 %v1470, 0.5
      %v1808 = vmul.f32 %v1654, 0.5
      %v1809 = vmul.f32 %v1088, 0.5
      %v1810 = vmul.f32 %v1090, 0.5
      %v1811 = vmul.f32 %v1281, 0.5
      %v1812 = vmul.f32 %v1283, 0.5
      %v1813 = vmul.f32 %v1474, 0.5
      %v1814 = vmul.f32 %v1476, 0.5
      %v1815 = vmul.f32 %v1659, 0.5
      %v1816 = vmul.f32 %v1092, 0.5
      %v1817 = vmul.f32 %v1094, 0.5
      %v1818 = vmul.f32 %v1285, 0.5
      %v1819 = vmul.f32 %v1287, 0.5
      %v1820 = vmul.f32 %v1478, 0.5
      %v1821 = vmul.f32 %v1480, 0.5
      %v1822 = vmul.f32 %v1662, 0.5
      %v1823 = vmul.f32 %v1098, 0.5
      %v1824 = vmul.f32 %v1100, 0.5
      %v1825 = vmul.f32 %v1291, 0.5
      %v1826 = vmul.f32 %v1293, 0.5
      %v1827 = vmul.f32 %v1484, 0.5
      %v1828 = vmul.f32 %v1486, 0.5
      %v1829 = vmul.f32 %v1667, 0.5
      %v1830 = vmul.f32 %v1102, 0.5
      %v1831 = vmul.f32 %v1104, 0.5
      %v1832 = vmul.f32 %v1295, 0.5
      %v1833 = vmul.f32 %v1297, 0.5
      %v1834 = vmul.f32 %v1488, 0.5
      %v1835 = vmul.f32 %v1490, 0.5
      %v1836 = vmul.f32 %v1670, 0.5
      %v1837 = vmul.f32 %v1108, 0.5
      %v1838 = vmul.f32 %v1110, 0.5
      %v1839 = vmul.f32 %v1301, 0.5
      %v1840 = vmul.f32 %v1303, 0.5
      %v1841 = vmul.f32 %v1494, 0.5
      %v1842 = vmul.f32 %v1496, 0.5
      %v1843 = vmul.f32 %v1675, 0.5
      %v1844 = vmul.f32 %v1112, 0.5
      %v1845 = vmul.f32 %v1114, 0.5
      %v1846 = vmul.f32 %v1305, 0.5
      %v1847 = vmul.f32 %v1307, 0.5
      %v1848 = vmul.f32 %v1498, 0.5
      %v1849 = vmul.f32 %v1500, 0.5
      %v1850 = vmul.f32 %v1678, 0.5
      %v1851 = vmul.f32 %v1118, 0.5
      %v1852 = vmul.f32 %v1120, 0.5
      %v1853 = vmul.f32 %v1311, 0.5
      %v1854 = vmul.f32 %v1313, 0.5
      %v1855 = vmul.f32 %v1504, 0.5
      %v1856 = vmul.f32 %v1506, 0.5
      %v1857 = vmul.f32 %v1683, 0.5
      %v1858 = vmul.f32 %v1122, 0.5
      %v1859 = vmul.f32 %v1124, 0.5
      %v1860 = vmul.f32 %v1315, 0.5
      %v1861 = vmul.f32 %v1317, 0.5
      %v1862 = vmul.f32 %v1508, 0.5
      %v1863 = vmul.f32 %v1510, 0.5
      %v1864 = vmul.f32 %v1686, 0.5
      %v1865 = vmul.f32 %v1128, 0.5
      %v1866 = vmul.f32 %v1130, 0.5
      %v1867 = vmul.f32 %v1321, 0.5
      %v1868 = vmul.f32 %v1323, 0.5
      %v1869 = vmul.f32 %v1514, 0.5
      %v1870 = vmul.f32 %v1516, 0.5
      %v1871 = vmul.f32 %v1691, 0.5
      %v1872 = vmul.f32 %v1132, 0.5
      %v1873 = vmul.f32 %v1134, 0.5
      %v1874 = vmul.f32 %v1325, 0.5
      %v1875 = vmul.f32 %v1327, 0.5
      %v1876 = vmul.f32 %v1518, 0.5
      %v1877 = vmul.f32 %v1520, 0.5
      %v1878 = vmul.f32 %v1694, 0.5
      %v1879 = vmul.f32 %v1138, 0.5
      %v1880 = vmul.f32 %v1140, 0.5
      %v1881 = vmul.f32 %v1331, 0.5
      %v1882 = vmul.f32 %v1333, 0.5
      %v1883 = vmul.f32 %v1524, 0.5
      %v1884 = vmul.f32 %v1526, 0.5
      %v1885 = vmul.f32 %v1699, 0.5
      %v1886 = vmul.f32 %v1142, 0.5
      %v1887 = vmul.f32 %v1144, 0.5
      %v1888 = vmul.f32 %v1335, 0.5
      %v1889 = vmul.f32 %v1337, 0.5
      %v1890 = vmul.f32 %v1528, 0.5
      %v1891 = vmul.f32 %v1530, 0.5
      %v1892 = vmul.f32 %v1702, 0.5
      %v1893 = vmul.f32 %v1148, 0.5
      %v1894 = vmul.f32 %v1150, 0.5
      %v1895 = vmul.f32 %v1341, 0.5
      %v1896 = vmul.f32 %v1343, 0.5
      %v1897 = vmul.f32 %v1534, 0.5
      %v1898 = vmul.f32 %v1536, 0.5
      %v1899 = vmul.f32 %v1707, 0.5
      %v1900 = vmul.f32 %v1152, 0.5
      %v1901 = vmul.f32 %v1154, 0.5
      %v1902 = vmul.f32 %v1345, 0.5
      %v1903 = vmul.f32 %v1347, 0.5
      %v1904 = vmul.f32 %v1538, 0.5
      %v1905 = vmul.f32 %v1540, 0.5
      %v1906 = vmul.f32 %v1710, 0.5
      %v1907 = vmul.f32 %v1158, 0.5
      %v1908 = vmul.f32 %v1160, 0.5
      %v1909 = vmul.f32 %v1351, 0.5
      %v1910 = vmul.f32 %v1353, 0.5
      %v1911 = vmul.f32 %v1544, 0.5
      %v1912 = vmul.f32 %v1546, 0.5
      %v1913 = vmul.f32 %v1715, 0.5
      %v1914 = vmul.f32 %v1162, 0.5
      %v1915 = vmul.f32 %v1164, 0.5
      %v1916 = vmul.f32 %v1355, 0.5
      %v1917 = vmul.f32 %v1357, 0.5
      %v1918 = vmul.f32 %v1548, 0.5
      %v1919 = vmul.f32 %v1550, 0.5
      %v1920 = vmul.f32 %v1718, 0.5
      %v1921 = vmul.f32 %v1168, 0.5
      %v1922 = vmul.f32 %v1170, 0.5
      %v1923 = vmul.f32 %v1361, 0.5
      %v1924 = vmul.f32 %v1363, 0.5
      %v1925 = vmul.f32 %v1554, 0.5
      %v1926 = vmul.f32 %v1556, 0.5
      %v1927 = vmul.f32 %v1723, 0.5
      %v1928 = vmul.f32 %v1172, 0.5
      %v1929 = vmul.f32 %v1174, 0.5
      %v1930 = vmul.f32 %v1365, 0.5
      %v1931 = vmul.f32 %v1367, 0.5
      %v1932 = vmul.f32 %v1558, 0.5
      %v1933 = vmul.f32 %v1560, 0.5
      %v1934 = vmul.f32 %v1726, 0.5
      %v1935 = vmul.f32 %v1178, 0.5
      %v1936 = vmul.f32 %v1180, 0.5
      %v1937 = vmul.f32 %v1371, 0.5
      %v1938 = vmul.f32 %v1373, 0.5
      %v1939 = vmul.f32 %v1564, 0.5
      %v1940 = vmul.f32 %v1566, 0.5
      %v1941 = vmul.f32 %v1731, 0.5
      %v1942 = vmul.f32 %v1182, 0.5
      %v1943 = vmul.f32 %v1184, 0.5
      %v1944 = vmul.f32 %v1375, 0.5
      %v1945 = vmul.f32 %v1377, 0.5
      %v1946 = vmul.f32 %v1568, 0.5
      %v1947 = vmul.f32 %v1570, 0.5
      %v1948 = vmul.f32 %v1734, 0.5
      %v1949 = vmul.f32 %v1188, 0.5
      %v1950 = vmul.f32 %v1190, 0.5
      %v1951 = vmul.f32 %v1381, 0.5
      %v1952 = vmul.f32 %v1383, 0.5
      %v1953 = vmul.f32 %v1574, 0.5
      %v1954 = vmul.f32 %v1576, 0.5
      %v1955 = vmul.f32 %v1739, 0.5
      %v1956 = vmul.f32 %v1192, 0.5
      %v1957 = vmul.f32 %v1194, 0.5
      %v1958 = vmul.f32 %v1385, 0.5
      %v1959 = vmul.f32 %v1387, 0.5
      %v1960 = vmul.f32 %v1578, 0.5
      %v1961 = vmul.f32 %v1580, 0.5
      %v1962 = vmul.f32 %v1742, 0.5
      %v1963 = vmul.f32 %v1198, 0.5
      %v1964 = vmul.f32 %v1200, 0.5
      %v1965 = vmul.f32 %v1391, 0.5
      %v1966 = vmul.f32 %v1393, 0.5
      %v1967 = vmul.f32 %v1584, 0.5
      %v1968 = vmul.f32 %v1586, 0.5
      %v1969 = vmul.f32 %v1747, 0.5
      %v1970 = vmul.f32 %v1202, 0.5
      %v1971 = vmul.f32 %v1204, 0.5
      %v1972 = vmul.f32 %v1395, 0.5
      %v1973 = vmul.f32 %v1397, 0.5
      %v1974 = vmul.f32 %v1588, 0.5
      %v1975 = vmul.f32 %v1590, 0.5
      %v1976 = vmul.f32 %v1750, 0.5
      %v1977 = vtanh.pop %v1753
      %v1978 = vtanh.pop %v1754
      %v1979 = vtanh.pop %v1755
      %v1980 = vtanh.pop %v1756
      %v1981 = vtanh.pop %v1757
      %v1982 = vtanh.pop %v1758
      %v1983 = vtanh.pop %v1759
      %v1984 = vtanh.pop %v1760
      %v1985 = vtanh.pop %v1761
      %v1986 = vtanh.pop %v1762
      %v1987 = vtanh.pop %v1763
      %v1988 = vtanh.pop %v1764
      %v1989 = vtanh.pop %v1765
      %v1990 = vtanh.pop %v1766
      %v1991 = vtanh.pop %v1767
      %v1992 = vtanh.pop %v1768
      %v1993 = vtanh.pop %v1769
      %v1994 = vtanh.pop %v1770
      %v1995 = vtanh.pop %v1771
      %v1996 = vtanh.pop %v1772
      %v1997 = vtanh.pop %v1773
      %v1998 = vtanh.pop %v1774
      %v1999 = vtanh.pop %v1775
      %v2000 = vtanh.pop %v1776
      %v2001 = vtanh.pop %v1777
      %v2002 = vtanh.pop %v1778
      %v2003 = vtanh.pop %v1779
      %v2004 = vtanh.pop %v1780
      %v2005 = vtanh.pop %v1781
      %v2006 = vtanh.pop %v1782
      %v2007 = vtanh.pop %v1783
      %v2008 = vtanh.pop %v1784
      %v2009 = vtanh.pop %v1785
      %v2010 = vtanh.pop %v1786
      %v2011 = vtanh.pop %v1787
      %v2012 = vtanh.pop %v1788
      %v2013 = vtanh.pop %v1789
      %v2014 = vtanh.pop %v1790
      %v2015 = vtanh.pop %v1791
      %v2016 = vtanh.pop %v1792
      %v2017 = vtanh.pop %v1793
      %v2018 = vtanh.pop %v1794
      %v2019 = vtanh.pop %v1795
      %v2020 = vtanh.pop %v1796
      %v2021 = vtanh.pop %v1797
      %v2022 = vtanh.pop %v1798
      %v2023 = vtanh.pop %v1799
      %v2024 = vtanh.pop %v1800
      %v2025 = vtanh.pop %v1801
      %v2026 = vtanh.pop %v1802
      %v2027 = vtanh.pop %v1803
      %v2028 = vtanh.pop %v1804
      %v2029 = vtanh.pop %v1805
      %v2030 = vtanh.pop %v1806
      %v2031 = vtanh.pop %v1807
      %v2032 = vtanh.pop %v1808
      %v2033 = vtanh.pop %v1809
      %v2034 = vtanh.pop %v1810
      %v2035 = vtanh.pop %v1811
      %v2036 = vtanh.pop %v1812
      %v2037 = vtanh.pop %v1813
      %v2038 = vtanh.pop %v1814
      %v2039 = vtanh.pop %v1815
      %v2040 = vtanh.pop %v1816
      %v2041 = vtanh.pop %v1817
      %v2042 = vtanh.pop %v1818
      %v2043 = vtanh.pop %v1819
      %v2044 = vtanh.pop %v1820
      %v2045 = vtanh.pop %v1821
      %v2046 = vtanh.pop %v1822
      %v2047 = vtanh.pop %v1823
      %v2048 = vtanh.pop %v1824
      %v2049 = vtanh.pop %v1825
      %v2050 = vtanh.pop %v1826
      %v2051 = vtanh.pop %v1827
      %v2052 = vtanh.pop %v1828
      %v2053 = vtanh.pop %v1829
      %v2054 = vtanh.pop %v1830
      %v2055 = vtanh.pop %v1831
      %v2056 = vtanh.pop %v1832
      %v2057 = vtanh.pop %v1833
      %v2058 = vtanh.pop %v1834
      %v2059 = vtanh.pop %v1835
      %v2060 = vtanh.pop %v1836
      %v2061 = vtanh.pop %v1837
      %v2062 = vtanh.pop %v1838
      %v2063 = vtanh.pop %v1839
      %v2064 = vtanh.pop %v1840
      %v2065 = vtanh.pop %v1841
      %v2066 = vtanh.pop %v1842
      %v2067 = vtanh.pop %v1843
      %v2068 = vtanh.pop %v1844
      %v2069 = vtanh.pop %v1845
      %v2070 = vtanh.pop %v1846
      %v2071 = vtanh.pop %v1847
      %v2072 = vtanh.pop %v1848
      %v2073 = vtanh.pop %v1849
      %v2074 = vtanh.pop %v1850
      %v2075 = vtanh.pop %v1851
      %v2076 = vtanh.pop %v1852
      %v2077 = vtanh.pop %v1853
      %v2078 = vtanh.pop %v1854
      %v2079 = vtanh.pop %v1855
      %v2080 = vtanh.pop %v1856
      %v2081 = vtanh.pop %v1857
      %v2082 = vtanh.pop %v1858
      %v2083 = vtanh.pop %v1859
      %v2084 = vtanh.pop %v1860
      %v2085 = vtanh.pop %v1861
      %v2086 = vtanh.pop %v1862
      %v2087 = vtanh.pop %v1863
      %v2088 = vtanh.pop %v1864
      %v2089 = vtanh.pop %v1865
      %v2090 = vtanh.pop %v1866
      %v2091 = vtanh.pop %v1867
      %v2092 = vtanh.pop %v1868
      %v2093 = vtanh.pop %v1869
      %v2094 = vtanh.pop %v1870
      %v2095 = vtanh.pop %v1871
      %v2096 = vtanh.pop %v1872
      %v2097 = vtanh.pop %v1873
      %v2098 = vtanh.pop %v1874
      %v2099 = vtanh.pop %v1875
      %v2100 = vtanh.pop %v1876
      %v2101 = vtanh.pop %v1877
      %v2102 = vtanh.pop %v1878
      %v2103 = vtanh.pop %v1879
      %v2104 = vtanh.pop %v1880
      %v2105 = vtanh.pop %v1881
      %v2106 = vtanh.pop %v1882
      %v2107 = vtanh.pop %v1883
      %v2108 = vtanh.pop %v1884
      %v2109 = vtanh.pop %v1885
      %v2110 = vtanh.pop %v1886
      %v2111 = vtanh.pop %v1887
      %v2112 = vtanh.pop %v1888
      %v2113 = vtanh.pop %v1889
      %v2114 = vtanh.pop %v1890
      %v2115 = vtanh.pop %v1891
      %v2116 = vtanh.pop %v1892
      %v2117 = vtanh.pop %v1893
      %v2118 = vtanh.pop %v1894
      %v2119 = vtanh.pop %v1895
      %v2120 = vtanh.pop %v1896
      %v2121 = vtanh.pop %v1897
      %v2122 = vtanh.pop %v1898
      %v2123 = vtanh.pop %v1899
      %v2124 = vtanh.pop %v1900
      %v2125 = vtanh.pop %v1901
      %v2126 = vtanh.pop %v1902
      %v2127 = vtanh.pop %v1903
      %v2128 = vtanh.pop %v1904
      %v2129 = vtanh.pop %v1905
      %v2130 = vtanh.pop %v1906
      %v2131 = vtanh.pop %v1907
      %v2132 = vtanh.pop %v1908
      %v2133 = vtanh.pop %v1909
      %v2134 = vtanh.pop %v1910
      %v2135 = vtanh.pop %v1911
      %v2136 = vtanh.pop %v1912
      %v2137 = vtanh.pop %v1913
      %v2138 = vtanh.pop %v1914
      %v2139 = vtanh.pop %v1915
      %v2140 = vtanh.pop %v1916
      %v2141 = vtanh.pop %v1917
      %v2142 = vtanh.pop %v1918
      %v2143 = vtanh.pop %v1919
      %v2144 = vtanh.pop %v1920
      %v2145 = vtanh.pop %v1921
      %v2146 = vtanh.pop %v1922
      %v2147 = vtanh.pop %v1923
      %v2148 = vtanh.pop %v1924
      %v2149 = vtanh.pop %v1925
      %v2150 = vtanh.pop %v1926
      %v2151 = vtanh.pop %v1927
      %v2152 = vtanh.pop %v1928
      %v2153 = vtanh.pop %v1929
      %v2154 = vtanh.pop %v1930
      %v2155 = vtanh.pop %v1931
      %v2156 = vtanh.pop %v1932
      %v2157 = vtanh.pop %v1933
      %v2158 = vtanh.pop %v1934
      %v2159 = vtanh.pop %v1935
      %v2160 = vtanh.pop %v1936
      %v2161 = vtanh.pop %v1937
      %v2162 = vtanh.pop %v1938
      %v2163 = vtanh.pop %v1939
      %v2164 = vtanh.pop %v1940
      %v2165 = vtanh.pop %v1941
      %v2166 = vtanh.pop %v1942
      %v2167 = vtanh.pop %v1943
      %v2168 = vtanh.pop %v1944
      %v2169 = vtanh.pop %v1945
      %v2170 = vtanh.pop %v1946
      %v2171 = vtanh.pop %v1947
      %v2172 = vtanh.pop %v1948
      %v2173 = vtanh.pop %v1949
      %v2174 = vtanh.pop %v1950
      %v2175 = vtanh.pop %v1951
      %v2176 = vtanh.pop %v1952
      %v2177 = vtanh.pop %v1953
      %v2178 = vtanh.pop %v1954
      %v2179 = vtanh.pop %v1955
      %v2180 = vtanh.pop %v1956
      %v2181 = vtanh.pop %v1957
      %v2182 = vtanh.pop %v1958
      %v2183 = vtanh.pop %v1959
      %v2184 = vtanh.pop %v1960
      %v2185 = vtanh.pop %v1961
      %v2186 = vtanh.pop %v1962
      %v2187 = vtanh.pop %v1963
      %v2188 = vtanh.pop %v1964
      %v2189 = vtanh.pop %v1965
      %v2190 = vtanh.pop %v1966
      %v2191 = vtanh.pop %v1967
      %v2192 = vtanh.pop %v1968
      %v2193 = vtanh.pop %v1969
      %v2194 = vtanh.pop %v1970
      %v2195 = vtanh.pop %v1971
      %v2196 = vtanh.pop %v1972
      %v2197 = vtanh.pop %v1973
      %v2198 = vtanh.pop %v1974
      %v2199 = vtanh.pop %v1975
      %v2200 = vtanh.pop %v1976
      %v2201 = vmul.f32 %v1977, 127.5
      %v2202 = vmul.f32 %v1978, 127.5
      %v2203 = vmul.f32 %v1979, 127.5
      %v2204 = vmul.f32 %v1980, 127.5
      %v2205 = vmul.f32 %v1981, 127.5
      %v2206 = vmul.f32 %v1982, 127.5
      %v2207 = vmul.f32 %v1983, 127.5
      %v2208 = vmul.f32 %v1984, 127.5
      %v2209 = vmul.f32 %v1985, 127.5
      %v2210 = vmul.f32 %v1986, 127.5
      %v2211 = vmul.f32 %v1987, 127.5
      %v2212 = vmul.f32 %v1988, 127.5
      %v2213 = vmul.f32 %v1989, 127.5
      %v2214 = vmul.f32 %v1990, 127.5
      %v2215 = vmul.f32 %v1991, 127.5
      %v2216 = vmul.f32 %v1992, 127.5
      %v2217 = vmul.f32 %v1993, 127.5
      %v2218 = vmul.f32 %v1994, 127.5
      %v2219 = vmul.f32 %v1995, 127.5
      %v2220 = vmul.f32 %v1996, 127.5
      %v2221 = vmul.f32 %v1997, 127.5
      %v2222 = vmul.f32 %v1998, 127.5
      %v2223 = vmul.f32 %v1999, 127.5
      %v2224 = vmul.f32 %v2000, 127.5
      %v2225 = vmul.f32 %v2001, 127.5
      %v2226 = vmul.f32 %v2002, 127.5
      %v2227 = vmul.f32 %v2003, 127.5
      %v2228 = vmul.f32 %v2004, 127.5
      %v2229 = vmul.f32 %v2005, 127.5
      %v2230 = vmul.f32 %v2006, 127.5
      %v2231 = vmul.f32 %v2007, 127.5
      %v2232 = vmul.f32 %v2008, 127.5
      %v2233 = vmul.f32 %v2009, 127.5
      %v2234 = vmul.f32 %v2010, 127.5
      %v2235 = vmul.f32 %v2011, 127.5
      %v2236 = vmul.f32 %v2012, 127.5
      %v2237 = vmul.f32 %v2013, 127.5
      %v2238 = vmul.f32 %v2014, 127.5
      %v2239 = vmul.f32 %v2015, 127.5
      %v2240 = vmul.f32 %v2016, 127.5
      %v2241 = vmul.f32 %v2017, 127.5
      %v2242 = vmul.f32 %v2018, 127.5
      %v2243 = vmul.f32 %v2019, 127.5
      %v2244 = vmul.f32 %v2020, 127.5
      %v2245 = vmul.f32 %v2021, 127.5
      %v2246 = vmul.f32 %v2022, 127.5
      %v2247 = vmul.f32 %v2023, 127.5
      %v2248 = vmul.f32 %v2024, 127.5
      %v2249 = vmul.f32 %v2025, 127.5
      %v2250 = vmul.f32 %v2026, 127.5
      %v2251 = vmul.f32 %v2027, 127.5
      %v2252 = vmul.f32 %v2028, 127.5
      %v2253 = vmul.f32 %v2029, 127.5
      %v2254 = vmul.f32 %v2030, 127.5
      %v2255 = vmul.f32 %v2031, 127.5
      %v2256 = vmul.f32 %v2032, 127.5
      %v2257 = vmul.f32 %v2033, 127.5
      %v2258 = vmul.f32 %v2034, 127.5
      %v2259 = vmul.f32 %v2035, 127.5
      %v2260 = vmul.f32 %v2036, 127.5
      %v2261 = vmul.f32 %v2037, 127.5
      %v2262 = vmul.f32 %v2038, 127.5
      %v2263 = vmul.f32 %v2039, 127.5
      %v2264 = vmul.f32 %v2040, 127.5
      %v2265 = vmul.f32 %v2041, 127.5
      %v2266 = vmul.f32 %v2042, 127.5
      %v2267 = vmul.f32 %v2043, 127.5
      %v2268 = vmul.f32 %v2044, 127.5
      %v2269 = vmul.f32 %v2045, 127.5
      %v2270 = vmul.f32 %v2046, 127.5
      %v2271 = vmul.f32 %v2047, 127.5
      %v2272 = vmul.f32 %v2048, 127.5
      %v2273 = vmul.f32 %v2049, 127.5
      %v2274 = vmul.f32 %v2050, 127.5
      %v2275 = vmul.f32 %v2051, 127.5
      %v2276 = vmul.f32 %v2052, 127.5
      %v2277 = vmul.f32 %v2053, 127.5
      %v2278 = vmul.f32 %v2054, 127.5
      %v2279 = vmul.f32 %v2055, 127.5
      %v2280 = vmul.f32 %v2056, 127.5
      %v2281 = vmul.f32 %v2057, 127.5
      %v2282 = vmul.f32 %v2058, 127.5
      %v2283 = vmul.f32 %v2059, 127.5
      %v2284 = vmul.f32 %v2060, 127.5
      %v2285 = vmul.f32 %v2061, 127.5
      %v2286 = vmul.f32 %v2062, 127.5
      %v2287 = vmul.f32 %v2063, 127.5
      %v2288 = vmul.f32 %v2064, 127.5
      %v2289 = vmul.f32 %v2065, 127.5
      %v2290 = vmul.f32 %v2066, 127.5
      %v2291 = vmul.f32 %v2067, 127.5
      %v2292 = vmul.f32 %v2068, 127.5
      %v2293 = vmul.f32 %v2069, 127.5
      %v2294 = vmul.f32 %v2070, 127.5
      %v2295 = vmul.f32 %v2071, 127.5
      %v2296 = vmul.f32 %v2072, 127.5
      %v2297 = vmul.f32 %v2073, 127.5
      %v2298 = vmul.f32 %v2074, 127.5
      %v2299 = vmul.f32 %v2075, 127.5
      %v2300 = vmul.f32 %v2076, 127.5
      %v2301 = vmul.f32 %v2077, 127.5
      %v2302 = vmul.f32 %v2078, 127.5
      %v2303 = vmul.f32 %v2079, 127.5
      %v2304 = vmul.f32 %v2080, 127.5
      %v2305 = vmul.f32 %v2081, 127.5
      %v2306 = vmul.f32 %v2082, 127.5
      %v2307 = vmul.f32 %v2083, 127.5
      %v2308 = vmul.f32 %v2084, 127.5
      %v2309 = vmul.f32 %v2085, 127.5
      %v2310 = vmul.f32 %v2086, 127.5
      %v2311 = vmul.f32 %v2087, 127.5
      %v2312 = vmul.f32 %v2088, 127.5
      %v2313 = vmul.f32 %v2089, 127.5
      %v2314 = vmul.f32 %v2090, 127.5
      %v2315 = vmul.f32 %v2091, 127.5
      %v2316 = vmul.f32 %v2092, 127.5
      %v2317 = vmul.f32 %v2093, 127.5
      %v2318 = vmul.f32 %v2094, 127.5
      %v2319 = vmul.f32 %v2095, 127.5
      %v2320 = vmul.f32 %v2096, 127.5
      %v2321 = vmul.f32 %v2097, 127.5
      %v2322 = vmul.f32 %v2098, 127.5
      %v2323 = vmul.f32 %v2099, 127.5
      %v2324 = vmul.f32 %v2100, 127.5
      %v2325 = vmul.f32 %v2101, 127.5
      %v2326 = vmul.f32 %v2102, 127.5
      %v2327 = vmul.f32 %v2103, 127.5
      %v2328 = vmul.f32 %v2104, 127.5
      %v2329 = vmul.f32 %v2105, 127.5
      %v2330 = vmul.f32 %v2106, 127.5
      %v2331 = vmul.f32 %v2107, 127.5
      %v2332 = vmul.f32 %v2108, 127.5
      %v2333 = vmul.f32 %v2109, 127.5
      %v2334 = vmul.f32 %v2110, 127.5
      %v2335 = vmul.f32 %v2111, 127.5
      %v2336 = vmul.f32 %v2112, 127.5
      %v2337 = vmul.f32 %v2113, 127.5
      %v2338 = vmul.f32 %v2114, 127.5
      %v2339 = vmul.f32 %v2115, 127.5
      %v2340 = vmul.f32 %v2116, 127.5
      %v2341 = vmul.f32 %v2117, 127.5
      %v2342 = vmul.f32 %v2118, 127.5
      %v2343 = vmul.f32 %v2119, 127.5
      %v2344 = vmul.f32 %v2120, 127.5
      %v2345 = vmul.f32 %v2121, 127.5
      %v2346 = vmul.f32 %v2122, 127.5
      %v2347 = vmul.f32 %v2123, 127.5
      %v2348 = vmul.f32 %v2124, 127.5
      %v2349 = vmul.f32 %v2125, 127.5
      %v2350 = vmul.f32 %v2126, 127.5
      %v2351 = vmul.f32 %v2127, 127.5
      %v2352 = vmul.f32 %v2128, 127.5
      %v2353 = vmul.f32 %v2129, 127.5
      %v2354 = vmul.f32 %v2130, 127.5
      %v2355 = vmul.f32 %v2131, 127.5
      %v2356 = vmul.f32 %v2132, 127.5
      %v2357 = vmul.f32 %v2133, 127.5
      %v2358 = vmul.f32 %v2134, 127.5
      %v2359 = vmul.f32 %v2135, 127.5
      %v2360 = vmul.f32 %v2136, 127.5
      %v2361 = vmul.f32 %v2137, 127.5
      %v2362 = vmul.f32 %v2138, 127.5
      %v2363 = vmul.f32 %v2139, 127.5
      %v2364 = vmul.f32 %v2140, 127.5
      %v2365 = vmul.f32 %v2141, 127.5
      %v2366 = vmul.f32 %v2142, 127.5
      %v2367 = vmul.f32 %v2143, 127.5
      %v2368 = vmul.f32 %v2144, 127.5
      %v2369 = vmul.f32 %v2145, 127.5
      %v2370 = vmul.f32 %v2146, 127.5
      %v2371 = vmul.f32 %v2147, 127.5
      %v2372 = vmul.f32 %v2148, 127.5
      %v2373 = vmul.f32 %v2149, 127.5
      %v2374 = vmul.f32 %v2150, 127.5
      %v2375 = vmul.f32 %v2151, 127.5
      %v2376 = vmul.f32 %v2152, 127.5
      %v2377 = vmul.f32 %v2153, 127.5
      %v2378 = vmul.f32 %v2154, 127.5
      %v2379 = vmul.f32 %v2155, 127.5
      %v2380 = vmul.f32 %v2156, 127.5
      %v2381 = vmul.f32 %v2157, 127.5
      %v2382 = vmul.f32 %v2158, 127.5
      %v2383 = vmul.f32 %v2159, 127.5
      %v2384 = vmul.f32 %v2160, 127.5
      %v2385 = vmul.f32 %v2161, 127.5
      %v2386 = vmul.f32 %v2162, 127.5
      %v2387 = vmul.f32 %v2163, 127.5
      %v2388 = vmul.f32 %v2164, 127.5
      %v2389 = vmul.f32 %v2165, 127.5
      %v2390 = vmul.f32 %v2166, 127.5
      %v2391 = vmul.f32 %v2167, 127.5
      %v2392 = vmul.f32 %v2168, 127.5
      %v2393 = vmul.f32 %v2169, 127.5
      %v2394 = vmul.f32 %v2170, 127.5
      %v2395 = vmul.f32 %v2171, 127.5
      %v2396 = vmul.f32 %v2172, 127.5
      %v2397 = vmul.f32 %v2173, 127.5
      %v2398 = vmul.f32 %v2174, 127.5
      %v2399 = vmul.f32 %v2175, 127.5
      %v2400 = vmul.f32 %v2176, 127.5
      %v2401 = vmul.f32 %v2177, 127.5
      %v2402 = vmul.f32 %v2178, 127.5
      %v2403 = vmul.f32 %v2179, 127.5
      %v2404 = vmul.f32 %v2180, 127.5
      %v2405 = vmul.f32 %v2181, 127.5
      %v2406 = vmul.f32 %v2182, 127.5
      %v2407 = vmul.f32 %v2183, 127.5
      %v2408 = vmul.f32 %v2184, 127.5
      %v2409 = vmul.f32 %v2185, 127.5
      %v2410 = vmul.f32 %v2186, 127.5
      %v2411 = vmul.f32 %v2187, 127.5
      %v2412 = vmul.f32 %v2188, 127.5
      %v2413 = vmul.f32 %v2189, 127.5
      %v2414 = vmul.f32 %v2190, 127.5
      %v2415 = vmul.f32 %v2191, 127.5
      %v2416 = vmul.f32 %v2192, 127.5
      %v2417 = vmul.f32 %v2193, 127.5
      %v2418 = vmul.f32 %v2194, 127.5
      %v2419 = vmul.f32 %v2195, 127.5
      %v2420 = vmul.f32 %v2196, 127.5
      %v2421 = vmul.f32 %v2197, 127.5
      %v2422 = vmul.f32 %v2198, 127.5
      %v2423 = vmul.f32 %v2199, 127.5
      %v2424 = vmul.f32 %v2200, 127.5
      %v2425 = vadd.f32 %v2201, 127.5
      %v2426 = vadd.f32 %v2202, 127.5
      %v2427 = vadd.f32 %v2203, 127.5
      %v2428 = vadd.f32 %v2204, 127.5
      %v2429 = vadd.f32 %v2205, 127.5
      %v2430 = vadd.f32 %v2206, 127.5
      %v2431 = vadd.f32 %v2207, 127.5
      %v2432 = vadd.f32 %v2208, 127.5
      %v2433 = vadd.f32 %v2209, 127.5
      %v2434 = vadd.f32 %v2210, 127.5
      %v2435 = vadd.f32 %v2211, 127.5
      %v2436 = vadd.f32 %v2212, 127.5
      %v2437 = vadd.f32 %v2213, 127.5
      %v2438 = vadd.f32 %v2214, 127.5
      %v2439 = vadd.f32 %v2215, 127.5
      %v2440 = vadd.f32 %v2216, 127.5
      %v2441 = vadd.f32 %v2217, 127.5
      %v2442 = vadd.f32 %v2218, 127.5
      %v2443 = vadd.f32 %v2219, 127.5
      %v2444 = vadd.f32 %v2220, 127.5
      %v2445 = vadd.f32 %v2221, 127.5
      %v2446 = vadd.f32 %v2222, 127.5
      %v2447 = vadd.f32 %v2223, 127.5
      %v2448 = vadd.f32 %v2224, 127.5
      %v2449 = vadd.f32 %v2225, 127.5
      %v2450 = vadd.f32 %v2226, 127.5
      %v2451 = vadd.f32 %v2227, 127.5
      %v2452 = vadd.f32 %v2228, 127.5
      %v2453 = vadd.f32 %v2229, 127.5
      %v2454 = vadd.f32 %v2230, 127.5
      %v2455 = vadd.f32 %v2231, 127.5
      %v2456 = vadd.f32 %v2232, 127.5
      %v2457 = vadd.f32 %v2233, 127.5
      %v2458 = vadd.f32 %v2234, 127.5
      %v2459 = vadd.f32 %v2235, 127.5
      %v2460 = vadd.f32 %v2236, 127.5
      %v2461 = vadd.f32 %v2237, 127.5
      %v2462 = vadd.f32 %v2238, 127.5
      %v2463 = vadd.f32 %v2239, 127.5
      %v2464 = vadd.f32 %v2240, 127.5
      %v2465 = vadd.f32 %v2241, 127.5
      %v2466 = vadd.f32 %v2242, 127.5
      %v2467 = vadd.f32 %v2243, 127.5
      %v2468 = vadd.f32 %v2244, 127.5
      %v2469 = vadd.f32 %v2245, 127.5
      %v2470 = vadd.f32 %v2246, 127.5
      %v2471 = vadd.f32 %v2247, 127.5
      %v2472 = vadd.f32 %v2248, 127.5
      %v2473 = vadd.f32 %v2249, 127.5
      %v2474 = vadd.f32 %v2250, 127.5
      %v2475 = vadd.f32 %v2251, 127.5
      %v2476 = vadd.f32 %v2252, 127.5
      %v2477 = vadd.f32 %v2253, 127.5
      %v2478 = vadd.f32 %v2254, 127.5
      %v2479 = vadd.f32 %v2255, 127.5
      %v2480 = vadd.f32 %v2256, 127.5
      %v2481 = vadd.f32 %v2257, 127.5
      %v2482 = vadd.f32 %v2258, 127.5
      %v2483 = vadd.f32 %v2259, 127.5
      %v2484 = vadd.f32 %v2260, 127.5
      %v2485 = vadd.f32 %v2261, 127.5
      %v2486 = vadd.f32 %v2262, 127.5
      %v2487 = vadd.f32 %v2263, 127.5
      %v2488 = vadd.f32 %v2264, 127.5
      %v2489 = vadd.f32 %v2265, 127.5
      %v2490 = vadd.f32 %v2266, 127.5
      %v2491 = vadd.f32 %v2267, 127.5
      %v2492 = vadd.f32 %v2268, 127.5
      %v2493 = vadd.f32 %v2269, 127.5
      %v2494 = vadd.f32 %v2270, 127.5
      %v2495 = vadd.f32 %v2271, 127.5
      %v2496 = vadd.f32 %v2272, 127.5
      %v2497 = vadd.f32 %v2273, 127.5
      %v2498 = vadd.f32 %v2274, 127.5
      %v2499 = vadd.f32 %v2275, 127.5
      %v2500 = vadd.f32 %v2276, 127.5
      %v2501 = vadd.f32 %v2277, 127.5
      %v2502 = vadd.f32 %v2278, 127.5
      %v2503 = vadd.f32 %v2279, 127.5
      %v2504 = vadd.f32 %v2280, 127.5
      %v2505 = vadd.f32 %v2281, 127.5
      %v2506 = vadd.f32 %v2282, 127.5
      %v2507 = vadd.f32 %v2283, 127.5
      %v2508 = vadd.f32 %v2284, 127.5
      %v2509 = vadd.f32 %v2285, 127.5
      %v2510 = vadd.f32 %v2286, 127.5
      %v2511 = vadd.f32 %v2287, 127.5
      %v2512 = vadd.f32 %v2288, 127.5
      %v2513 = vadd.f32 %v2289, 127.5
      %v2514 = vadd.f32 %v2290, 127.5
      %v2515 = vadd.f32 %v2291, 127.5
      %v2516 = vadd.f32 %v2292, 127.5
      %v2517 = vadd.f32 %v2293, 127.5
      %v2518 = vadd.f32 %v2294, 127.5
      %v2519 = vadd.f32 %v2295, 127.5
      %v2520 = vadd.f32 %v2296, 127.5
      %v2521 = vadd.f32 %v2297, 127.5
      %v2522 = vadd.f32 %v2298, 127.5
      %v2523 = vadd.f32 %v2299, 127.5
      %v2524 = vadd.f32 %v2300, 127.5
      %v2525 = vadd.f32 %v2301, 127.5
      %v2526 = vadd.f32 %v2302, 127.5
      %v2527 = vadd.f32 %v2303, 127.5
      %v2528 = vadd.f32 %v2304, 127.5
      %v2529 = vadd.f32 %v2305, 127.5
      %v2530 = vadd.f32 %v2306, 127.5
      %v2531 = vadd.f32 %v2307, 127.5
      %v2532 = vadd.f32 %v2308, 127.5
      %v2533 = vadd.f32 %v2309, 127.5
      %v2534 = vadd.f32 %v2310, 127.5
      %v2535 = vadd.f32 %v2311, 127.5
      %v2536 = vadd.f32 %v2312, 127.5
      %v2537 = vadd.f32 %v2313, 127.5
      %v2538 = vadd.f32 %v2314, 127.5
      %v2539 = vadd.f32 %v2315, 127.5
      %v2540 = vadd.f32 %v2316, 127.5
      %v2541 = vadd.f32 %v2317, 127.5
      %v2542 = vadd.f32 %v2318, 127.5
      %v2543 = vadd.f32 %v2319, 127.5
      %v2544 = vadd.f32 %v2320, 127.5
      %v2545 = vadd.f32 %v2321, 127.5
      %v2546 = vadd.f32 %v2322, 127.5
      %v2547 = vadd.f32 %v2323, 127.5
      %v2548 = vadd.f32 %v2324, 127.5
      %v2549 = vadd.f32 %v2325, 127.5
      %v2550 = vadd.f32 %v2326, 127.5
      %v2551 = vadd.f32 %v2327, 127.5
      %v2552 = vadd.f32 %v2328, 127.5
      %v2553 = vadd.f32 %v2329, 127.5
      %v2554 = vadd.f32 %v2330, 127.5
      %v2555 = vadd.f32 %v2331, 127.5
      %v2556 = vadd.f32 %v2332, 127.5
      %v2557 = vadd.f32 %v2333, 127.5
      %v2558 = vadd.f32 %v2334, 127.5
      %v2559 = vadd.f32 %v2335, 127.5
      %v2560 = vadd.f32 %v2336, 127.5
      %v2561 = vadd.f32 %v2337, 127.5
      %v2562 = vadd.f32 %v2338, 127.5
      %v2563 = vadd.f32 %v2339, 127.5
      %v2564 = vadd.f32 %v2340, 127.5
      %v2565 = vadd.f32 %v2341, 127.5
      %v2566 = vadd.f32 %v2342, 127.5
      %v2567 = vadd.f32 %v2343, 127.5
      %v2568 = vadd.f32 %v2344, 127.5
      %v2569 = vadd.f32 %v2345, 127.5
      %v2570 = vadd.f32 %v2346, 127.5
      %v2571 = vadd.f32 %v2347, 127.5
      %v2572 = vadd.f32 %v2348, 127.5
      %v2573 = vadd.f32 %v2349, 127.5
      %v2574 = vadd.f32 %v2350, 127.5
      %v2575 = vadd.f32 %v2351, 127.5
      %v2576 = vadd.f32 %v2352, 127.5
      %v2577 = vadd.f32 %v2353, 127.5
      %v2578 = vadd.f32 %v2354, 127.5
      %v2579 = vadd.f32 %v2355, 127.5
      %v2580 = vadd.f32 %v2356, 127.5
      %v2581 = vadd.f32 %v2357, 127.5
      %v2582 = vadd.f32 %v2358, 127.5
      %v2583 = vadd.f32 %v2359, 127.5
      %v2584 = vadd.f32 %v2360, 127.5
      %v2585 = vadd.f32 %v2361, 127.5
      %v2586 = vadd.f32 %v2362, 127.5
      %v2587 = vadd.f32 %v2363, 127.5
      %v2588 = vadd.f32 %v2364, 127.5
      %v2589 = vadd.f32 %v2365, 127.5
      %v2590 = vadd.f32 %v2366, 127.5
      %v2591 = vadd.f32 %v2367, 127.5
      %v2592 = vadd.f32 %v2368, 127.5
      %v2593 = vadd.f32 %v2369, 127.5
      %v2594 = vadd.f32 %v2370, 127.5
      %v2595 = vadd.f32 %v2371, 127.5
      %v2596 = vadd.f32 %v2372, 127.5
      %v2597 = vadd.f32 %v2373, 127.5
      %v2598 = vadd.f32 %v2374, 127.5
      %v2599 = vadd.f32 %v2375, 127.5
      %v2600 = vadd.f32 %v2376, 127.5
      %v2601 = vadd.f32 %v2377, 127.5
      %v2602 = vadd.f32 %v2378, 127.5
      %v2603 = vadd.f32 %v2379, 127.5
      %v2604 = vadd.f32 %v2380, 127.5
      %v2605 = vadd.f32 %v2381, 127.5
      %v2606 = vadd.f32 %v2382, 127.5
      %v2607 = vadd.f32 %v2383, 127.5
      %v2608 = vadd.f32 %v2384, 127.5
      %v2609 = vadd.f32 %v2385, 127.5
      %v2610 = vadd.f32 %v2386, 127.5
      %v2611 = vadd.f32 %v2387, 127.5
      %v2612 = vadd.f32 %v2388, 127.5
      %v2613 = vadd.f32 %v2389, 127.5
      %v2614 = vadd.f32 %v2390, 127.5
      %v2615 = vadd.f32 %v2391, 127.5
      %v2616 = vadd.f32 %v2392, 127.5
      %v2617 = vadd.f32 %v2393, 127.5
      %v2618 = vadd.f32 %v2394, 127.5
      %v2619 = vadd.f32 %v2395, 127.5
      %v2620 = vadd.f32 %v2396, 127.5
      %v2621 = vadd.f32 %v2397, 127.5
      %v2622 = vadd.f32 %v2398, 127.5
      %v2623 = vadd.f32 %v2399, 127.5
      %v2624 = vadd.f32 %v2400, 127.5
      %v2625 = vadd.f32 %v2401, 127.5
      %v2626 = vadd.f32 %v2402, 127.5
      %v2627 = vadd.f32 %v2403, 127.5
      %v2628 = vadd.f32 %v2404, 127.5
      %v2629 = vadd.f32 %v2405, 127.5
      %v2630 = vadd.f32 %v2406, 127.5
      %v2631 = vadd.f32 %v2407, 127.5
      %v2632 = vadd.f32 %v2408, 127.5
      %v2633 = vadd.f32 %v2409, 127.5
      %v2634 = vadd.f32 %v2410, 127.5
      %v2635 = vadd.f32 %v2411, 127.5
      %v2636 = vadd.f32 %v2412, 127.5
      %v2637 = vadd.f32 %v2413, 127.5
      %v2638 = vadd.f32 %v2414, 127.5
      %v2639 = vadd.f32 %v2415, 127.5
      %v2640 = vadd.f32 %v2416, 127.5
      %v2641 = vadd.f32 %v2417, 127.5
      %v2642 = vadd.f32 %v2418, 127.5
      %v2643 = vadd.f32 %v2419, 127.5
      %v2644 = vadd.f32 %v2420, 127.5
      %v2645 = vadd.f32 %v2421, 127.5
      %v2646 = vadd.f32 %v2422, 127.5
      %v2647 = vadd.f32 %v2423, 127.5
      %v2648 = vadd.f32 %v2424, 127.5
      %v2649 = vpack.c.bf16 %v2432, %v2425
      %v2650 = vpack.c.bf16 %v2433, %v2426
      %v2651 = vpack.c.bf16 %v2434, %v2427
      %v2652 = vpack.c.bf16 %v2435, %v2428
      %v2653 = vpack.c.bf16 %v2436, %v2429
      %v2654 = vpack.c.bf16 %v2437, %v2430
      %v2655 = vpack.c.bf16 %v2438, %v2431
      %v2656 = vpack.c.bf16 %v2446, %v2439
      %v2657 = vpack.c.bf16 %v2447, %v2440
      %v2658 = vpack.c.bf16 %v2448, %v2441
      %v2659 = vpack.c.bf16 %v2449, %v2442
      %v2660 = vpack.c.bf16 %v2450, %v2443
      %v2661 = vpack.c.bf16 %v2451, %v2444
      %v2662 = vpack.c.bf16 %v2452, %v2445
      %v2663 = vpack.c.bf16 %v2460, %v2453
      %v2664 = vpack.c.bf16 %v2461, %v2454
      %v2665 = vpack.c.bf16 %v2462, %v2455
      %v2666 = vpack.c.bf16 %v2463, %v2456
      %v2667 = vpack.c.bf16 %v2464, %v2457
      %v2668 = vpack.c.bf16 %v2465, %v2458
      %v2669 = vpack.c.bf16 %v2466, %v2459
      %v2670 = vpack.c.bf16 %v2474, %v2467
      %v2671 = vpack.c.bf16 %v2475, %v2468
      %v2672 = vpack.c.bf16 %v2476, %v2469
      %v2673 = vpack.c.bf16 %v2477, %v2470
      %v2674 = vpack.c.bf16 %v2478, %v2471
      %v2675 = vpack.c.bf16 %v2479, %v2472
      %v2676 = vpack.c.bf16 %v2480, %v2473
      %v2677 = vpack.c.bf16 %v2488, %v2481
      %v2678 = vpack.c.bf16 %v2489, %v2482
      %v2679 = vpack.c.bf16 %v2490, %v2483
      %v2680 = vpack.c.bf16 %v2491, %v2484
      %v2681 = vpack.c.bf16 %v2492, %v2485
      %v2682 = vpack.c.bf16 %v2493, %v2486
      %v2683 = vpack.c.bf16 %v2494, %v2487
      %v2684 = vpack.c.bf16 %v2502, %v2495
      %v2685 = vpack.c.bf16 %v2503, %v2496
      %v2686 = vpack.c.bf16 %v2504, %v2497
      %v2687 = vpack.c.bf16 %v2505, %v2498
      %v2688 = vpack.c.bf16 %v2506, %v2499
      %v2689 = vpack.c.bf16 %v2507, %v2500
      %v2690 = vpack.c.bf16 %v2508, %v2501
      %v2691 = vpack.c.bf16 %v2516, %v2509
      %v2692 = vpack.c.bf16 %v2517, %v2510
      %v2693 = vpack.c.bf16 %v2518, %v2511
      %v2694 = vpack.c.bf16 %v2519, %v2512
      %v2695 = vpack.c.bf16 %v2520, %v2513
      %v2696 = vpack.c.bf16 %v2521, %v2514
      %v2697 = vpack.c.bf16 %v2522, %v2515
      %v2698 = vpack.c.bf16 %v2530, %v2523
      %v2699 = vpack.c.bf16 %v2531, %v2524
      %v2700 = vpack.c.bf16 %v2532, %v2525
      %v2701 = vpack.c.bf16 %v2533, %v2526
      %v2702 = vpack.c.bf16 %v2534, %v2527
      %v2703 = vpack.c.bf16 %v2535, %v2528
      %v2704 = vpack.c.bf16 %v2536, %v2529
      %v2705 = vpack.c.bf16 %v2544, %v2537
      %v2706 = vpack.c.bf16 %v2545, %v2538
      %v2707 = vpack.c.bf16 %v2546, %v2539
      %v2708 = vpack.c.bf16 %v2547, %v2540
      %v2709 = vpack.c.bf16 %v2548, %v2541
      %v2710 = vpack.c.bf16 %v2549, %v2542
      %v2711 = vpack.c.bf16 %v2550, %v2543
      %v2712 = vpack.c.bf16 %v2558, %v2551
      %v2713 = vpack.c.bf16 %v2559, %v2552
      %v2714 = vpack.c.bf16 %v2560, %v2553
      %v2715 = vpack.c.bf16 %v2561, %v2554
      %v2716 = vpack.c.bf16 %v2562, %v2555
      %v2717 = vpack.c.bf16 %v2563, %v2556
      %v2718 = vpack.c.bf16 %v2564, %v2557
      %v2719 = vpack.c.bf16 %v2572, %v2565
      %v2720 = vpack.c.bf16 %v2573, %v2566
      %v2721 = vpack.c.bf16 %v2574, %v2567
      %v2722 = vpack.c.bf16 %v2575, %v2568
      %v2723 = vpack.c.bf16 %v2576, %v2569
      %v2724 = vpack.c.bf16 %v2577, %v2570
      %v2725 = vpack.c.bf16 %v2578, %v2571
      %v2726 = vpack.c.bf16 %v2586, %v2579
      %v2727 = vpack.c.bf16 %v2587, %v2580
      %v2728 = vpack.c.bf16 %v2588, %v2581
      %v2729 = vpack.c.bf16 %v2589, %v2582
      %v2730 = vpack.c.bf16 %v2590, %v2583
      %v2731 = vpack.c.bf16 %v2591, %v2584
      %v2732 = vpack.c.bf16 %v2592, %v2585
      %v2733 = vpack.c.bf16 %v2600, %v2593
      %v2734 = vpack.c.bf16 %v2601, %v2594
      %v2735 = vpack.c.bf16 %v2602, %v2595
      %v2736 = vpack.c.bf16 %v2603, %v2596
      %v2737 = vpack.c.bf16 %v2604, %v2597
      %v2738 = vpack.c.bf16 %v2605, %v2598
      %v2739 = vpack.c.bf16 %v2606, %v2599
      %v2740 = vpack.c.bf16 %v2614, %v2607
      %v2741 = vpack.c.bf16 %v2615, %v2608
      %v2742 = vpack.c.bf16 %v2616, %v2609
      %v2743 = vpack.c.bf16 %v2617, %v2610
      %v2744 = vpack.c.bf16 %v2618, %v2611
      %v2745 = vpack.c.bf16 %v2619, %v2612
      %v2746 = vpack.c.bf16 %v2620, %v2613
      %v2747 = vpack.c.bf16 %v2628, %v2621
      %v2748 = vpack.c.bf16 %v2629, %v2622
      %v2749 = vpack.c.bf16 %v2630, %v2623
      %v2750 = vpack.c.bf16 %v2631, %v2624
      %v2751 = vpack.c.bf16 %v2632, %v2625
      %v2752 = vpack.c.bf16 %v2633, %v2626
      %v2753 = vpack.c.bf16 %v2634, %v2627
      %v2754 = vpack.c.bf16 %v2642, %v2635
      %v2755 = vpack.c.bf16 %v2643, %v2636
      %v2756 = vpack.c.bf16 %v2644, %v2637
      %v2757 = vpack.c.bf16 %v2645, %v2638
      %v2758 = vpack.c.bf16 %v2646, %v2639
      %v2759 = vpack.c.bf16 %v2647, %v2640
      %v2760 = vpack.c.bf16 %v2648, %v2641
      %v2873 = vunpack.c.l.b16 %v2649
      %v2874 = vunpack.c.l.b16 %v2650
      %v2875 = vunpack.c.l.b16 %v2651
      %v2876 = vunpack.c.l.b16 %v2652
      %v2877 = vunpack.c.l.b16 %v2653
      %v2878 = vunpack.c.l.b16 %v2654
      %v2879 = vunpack.c.l.b16 %v2655
      %v2880 = vunpack.c.h.b16 %v2649
      %v2881 = vunpack.c.h.b16 %v2650
      %v2882 = vunpack.c.h.b16 %v2651
      %v2883 = vunpack.c.h.b16 %v2652
      %v2884 = vunpack.c.h.b16 %v2653
      %v2885 = vunpack.c.h.b16 %v2654
      %v2886 = vunpack.c.h.b16 %v2655
      %v2887 = vunpack.c.l.b16 %v2656
      %v2888 = vunpack.c.l.b16 %v2657
      %v2889 = vunpack.c.l.b16 %v2658
      %v2890 = vunpack.c.l.b16 %v2659
      %v2891 = vunpack.c.l.b16 %v2660
      %v2892 = vunpack.c.l.b16 %v2661
      %v2893 = vunpack.c.l.b16 %v2662
      %v2894 = vunpack.c.h.b16 %v2656
      %v2895 = vunpack.c.h.b16 %v2657
      %v2896 = vunpack.c.h.b16 %v2658
      %v2897 = vunpack.c.h.b16 %v2659
      %v2898 = vunpack.c.h.b16 %v2660
      %v2899 = vunpack.c.h.b16 %v2661
      %v2900 = vunpack.c.h.b16 %v2662
      %v2901 = vunpack.c.l.b16 %v2663
      %v2902 = vunpack.c.l.b16 %v2664
      %v2903 = vunpack.c.l.b16 %v2665
      %v2904 = vunpack.c.l.b16 %v2666
      %v2905 = vunpack.c.l.b16 %v2667
      %v2906 = vunpack.c.l.b16 %v2668
      %v2907 = vunpack.c.l.b16 %v2669
      %v2908 = vunpack.c.h.b16 %v2663
      %v2909 = vunpack.c.h.b16 %v2664
      %v2910 = vunpack.c.h.b16 %v2665
      %v2911 = vunpack.c.h.b16 %v2666
      %v2912 = vunpack.c.h.b16 %v2667
      %v2913 = vunpack.c.h.b16 %v2668
      %v2914 = vunpack.c.h.b16 %v2669
      %v2915 = vunpack.c.l.b16 %v2670
      %v2916 = vunpack.c.l.b16 %v2671
      %v2917 = vunpack.c.l.b16 %v2672
      %v2918 = vunpack.c.l.b16 %v2673
      %v2919 = vunpack.c.l.b16 %v2674
      %v2920 = vunpack.c.l.b16 %v2675
      %v2921 = vunpack.c.l.b16 %v2676
      %v2922 = vunpack.c.h.b16 %v2670
      %v2923 = vunpack.c.h.b16 %v2671
      %v2924 = vunpack.c.h.b16 %v2672
      %v2925 = vunpack.c.h.b16 %v2673
      %v2926 = vunpack.c.h.b16 %v2674
      %v2927 = vunpack.c.h.b16 %v2675
      %v2928 = vunpack.c.h.b16 %v2676
      %v2929 = vunpack.c.l.b16 %v2677
      %v2930 = vunpack.c.l.b16 %v2678
      %v2931 = vunpack.c.l.b16 %v2679
      %v2932 = vunpack.c.l.b16 %v2680
      %v2933 = vunpack.c.l.b16 %v2681
      %v2934 = vunpack.c.l.b16 %v2682
      %v2935 = vunpack.c.l.b16 %v2683
      %v2936 = vunpack.c.h.b16 %v2677
      %v2937 = vunpack.c.h.b16 %v2678
      %v2938 = vunpack.c.h.b16 %v2679
      %v2939 = vunpack.c.h.b16 %v2680
      %v2940 = vunpack.c.h.b16 %v2681
      %v2941 = vunpack.c.h.b16 %v2682
      %v2942 = vunpack.c.h.b16 %v2683
      %v2943 = vunpack.c.l.b16 %v2684
      %v2944 = vunpack.c.l.b16 %v2685
      %v2945 = vunpack.c.l.b16 %v2686
      %v2946 = vunpack.c.l.b16 %v2687
      %v2947 = vunpack.c.l.b16 %v2688
      %v2948 = vunpack.c.l.b16 %v2689
      %v2949 = vunpack.c.l.b16 %v2690
      %v2950 = vunpack.c.h.b16 %v2684
      %v2951 = vunpack.c.h.b16 %v2685
      %v2952 = vunpack.c.h.b16 %v2686
      %v2953 = vunpack.c.h.b16 %v2687
      %v2954 = vunpack.c.h.b16 %v2688
      %v2955 = vunpack.c.h.b16 %v2689
      %v2956 = vunpack.c.h.b16 %v2690
      %v2957 = vunpack.c.l.b16 %v2691
      %v2958 = vunpack.c.l.b16 %v2692
      %v2959 = vunpack.c.l.b16 %v2693
      %v2960 = vunpack.c.l.b16 %v2694
      %v2961 = vunpack.c.l.b16 %v2695
      %v2962 = vunpack.c.l.b16 %v2696
      %v2963 = vunpack.c.l.b16 %v2697
      %v2964 = vunpack.c.h.b16 %v2691
      %v2965 = vunpack.c.h.b16 %v2692
      %v2966 = vunpack.c.h.b16 %v2693
      %v2967 = vunpack.c.h.b16 %v2694
      %v2968 = vunpack.c.h.b16 %v2695
      %v2969 = vunpack.c.h.b16 %v2696
      %v2970 = vunpack.c.h.b16 %v2697
      %v2971 = vunpack.c.l.b16 %v2698
      %v2972 = vunpack.c.l.b16 %v2699
      %v2973 = vunpack.c.l.b16 %v2700
      %v2974 = vunpack.c.l.b16 %v2701
      %v2975 = vunpack.c.l.b16 %v2702
      %v2976 = vunpack.c.l.b16 %v2703
      %v2977 = vunpack.c.l.b16 %v2704
      %v2978 = vunpack.c.h.b16 %v2698
      %v2979 = vunpack.c.h.b16 %v2699
      %v2980 = vunpack.c.h.b16 %v2700
      %v2981 = vunpack.c.h.b16 %v2701
      %v2982 = vunpack.c.h.b16 %v2702
      %v2983 = vunpack.c.h.b16 %v2703
      %v2984 = vunpack.c.h.b16 %v2704
      %v2985 = vunpack.c.l.b16 %v2705
      %v2986 = vunpack.c.l.b16 %v2706
      %v2987 = vunpack.c.l.b16 %v2707
      %v2988 = vunpack.c.l.b16 %v2708
      %v2989 = vunpack.c.l.b16 %v2709
      %v2990 = vunpack.c.l.b16 %v2710
      %v2991 = vunpack.c.l.b16 %v2711
      %v2992 = vunpack.c.h.b16 %v2705
      %v2993 = vunpack.c.h.b16 %v2706
      %v2994 = vunpack.c.h.b16 %v2707
      %v2995 = vunpack.c.h.b16 %v2708
      %v2996 = vunpack.c.h.b16 %v2709
      %v2997 = vunpack.c.h.b16 %v2710
      %v2998 = vunpack.c.h.b16 %v2711
      %v2999 = vunpack.c.l.b16 %v2712
      %v3000 = vunpack.c.l.b16 %v2713
      %v3001 = vunpack.c.l.b16 %v2714
      %v3002 = vunpack.c.l.b16 %v2715
      %v3003 = vunpack.c.l.b16 %v2716
      %v3004 = vunpack.c.l.b16 %v2717
      %v3005 = vunpack.c.l.b16 %v2718
      %v3006 = vunpack.c.h.b16 %v2712
      %v3007 = vunpack.c.h.b16 %v2713
      %v3008 = vunpack.c.h.b16 %v2714
      %v3009 = vunpack.c.h.b16 %v2715
      %v3010 = vunpack.c.h.b16 %v2716
      %v3011 = vunpack.c.h.b16 %v2717
      %v3012 = vunpack.c.h.b16 %v2718
      %v3013 = vunpack.c.l.b16 %v2719
      %v3014 = vunpack.c.l.b16 %v2720
      %v3015 = vunpack.c.l.b16 %v2721
      %v3016 = vunpack.c.l.b16 %v2722
      %v3017 = vunpack.c.l.b16 %v2723
      %v3018 = vunpack.c.l.b16 %v2724
      %v3019 = vunpack.c.l.b16 %v2725
      %v3020 = vunpack.c.h.b16 %v2719
      %v3021 = vunpack.c.h.b16 %v2720
      %v3022 = vunpack.c.h.b16 %v2721
      %v3023 = vunpack.c.h.b16 %v2722
      %v3024 = vunpack.c.h.b16 %v2723
      %v3025 = vunpack.c.h.b16 %v2724
      %v3026 = vunpack.c.h.b16 %v2725
      %v3027 = vunpack.c.l.b16 %v2726
      %v3028 = vunpack.c.l.b16 %v2727
      %v3029 = vunpack.c.l.b16 %v2728
      %v3030 = vunpack.c.l.b16 %v2729
      %v3031 = vunpack.c.l.b16 %v2730
      %v3032 = vunpack.c.l.b16 %v2731
      %v3033 = vunpack.c.l.b16 %v2732
      %v3034 = vunpack.c.h.b16 %v2726
      %v3035 = vunpack.c.h.b16 %v2727
      %v3036 = vunpack.c.h.b16 %v2728
      %v3037 = vunpack.c.h.b16 %v2729
      %v3038 = vunpack.c.h.b16 %v2730
      %v3039 = vunpack.c.h.b16 %v2731
      %v3040 = vunpack.c.h.b16 %v2732
      %v3041 = vunpack.c.l.b16 %v2733
      %v3042 = vunpack.c.l.b16 %v2734
      %v3043 = vunpack.c.l.b16 %v2735
      %v3044 = vunpack.c.l.b16 %v2736
      %v3045 = vunpack.c.l.b16 %v2737
      %v3046 = vunpack.c.l.b16 %v2738
      %v3047 = vunpack.c.l.b16 %v2739
      %v3048 = vunpack.c.h.b16 %v2733
      %v3049 = vunpack.c.h.b16 %v2734
      %v3050 = vunpack.c.h.b16 %v2735
      %v3051 = vunpack.c.h.b16 %v2736
      %v3052 = vunpack.c.h.b16 %v2737
      %v3053 = vunpack.c.h.b16 %v2738
      %v3054 = vunpack.c.h.b16 %v2739
      %v3055 = vunpack.c.l.b16 %v2740
      %v3056 = vunpack.c.l.b16 %v2741
      %v3057 = vunpack.c.l.b16 %v2742
      %v3058 = vunpack.c.l.b16 %v2743
      %v3059 = vunpack.c.l.b16 %v2744
      %v3060 = vunpack.c.l.b16 %v2745
      %v3061 = vunpack.c.l.b16 %v2746
      %v3062 = vunpack.c.h.b16 %v2740
      %v3063 = vunpack.c.h.b16 %v2741
      %v3064 = vunpack.c.h.b16 %v2742
      %v3065 = vunpack.c.h.b16 %v2743
      %v3066 = vunpack.c.h.b16 %v2744
      %v3067 = vunpack.c.h.b16 %v2745
      %v3068 = vunpack.c.h.b16 %v2746
      %v3069 = vunpack.c.l.b16 %v2747
      %v3070 = vunpack.c.l.b16 %v2748
      %v3071 = vunpack.c.l.b16 %v2749
      %v3072 = vunpack.c.l.b16 %v2750
      %v3073 = vunpack.c.l.b16 %v2751
      %v3074 = vunpack.c.l.b16 %v2752
      %v3075 = vunpack.c.l.b16 %v2753
      %v3076 = vunpack.c.h.b16 %v2747
      %v3077 = vunpack.c.h.b16 %v2748
      %v3078 = vunpack.c.h.b16 %v2749
      %v3079 = vunpack.c.h.b16 %v2750
      %v3080 = vunpack.c.h.b16 %v2751
      %v3081 = vunpack.c.h.b16 %v2752
      %v3082 = vunpack.c.h.b16 %v2753
      %v3083 = vunpack.c.l.b16 %v2754
      %v3084 = vunpack.c.l.b16 %v2755
      %v3085 = vunpack.c.l.b16 %v2756
      %v3086 = vunpack.c.l.b16 %v2757
      %v3087 = vunpack.c.l.b16 %v2758
      %v3088 = vunpack.c.l.b16 %v2759
      %v3089 = vunpack.c.l.b16 %v2760
      %v3090 = vunpack.c.h.b16 %v2754
      %v3091 = vunpack.c.h.b16 %v2755
      %v3092 = vunpack.c.h.b16 %v2756
      %v3093 = vunpack.c.h.b16 %v2757
      %v3094 = vunpack.c.h.b16 %v2758
      %v3095 = vunpack.c.h.b16 %v2759
      %v3096 = vunpack.c.h.b16 %v2760
      %v3097 = vpack.c.b16 %v2874, %v2873
      %v3098 = vpack.c.b16 %v2876, %v2875
      %v3099 = vpack.c.b16 %v2878, %v2877
      %v3100 = vpack.c.b16 %v2879, %v2879
      %v3101 = vpack.c.b16 %v2881, %v2880
      %v3102 = vpack.c.b16 %v2883, %v2882
      %v3103 = vpack.c.b16 %v2885, %v2884
      %v3104 = vpack.c.b16 %v2886, %v2886
      %v3105 = vpack.c.b16 %v2888, %v2887
      %v3106 = vpack.c.b16 %v2890, %v2889
      %v3107 = vpack.c.b16 %v2892, %v2891
      %v3108 = vpack.c.b16 %v2893, %v2893
      %v3109 = vpack.c.b16 %v2895, %v2894
      %v3110 = vpack.c.b16 %v2897, %v2896
      %v3111 = vpack.c.b16 %v2899, %v2898
      %v3112 = vpack.c.b16 %v2900, %v2900
      %v3113 = vpack.c.b16 %v2902, %v2901
      %v3114 = vpack.c.b16 %v2904, %v2903
      %v3115 = vpack.c.b16 %v2906, %v2905
      %v3116 = vpack.c.b16 %v2907, %v2907
      %v3117 = vpack.c.b16 %v2909, %v2908
      %v3118 = vpack.c.b16 %v2911, %v2910
      %v3119 = vpack.c.b16 %v2913, %v2912
      %v3120 = vpack.c.b16 %v2914, %v2914
      %v3121 = vpack.c.b16 %v2916, %v2915
      %v3122 = vpack.c.b16 %v2918, %v2917
      %v3123 = vpack.c.b16 %v2920, %v2919
      %v3124 = vpack.c.b16 %v2921, %v2921
      %v3125 = vpack.c.b16 %v2923, %v2922
      %v3126 = vpack.c.b16 %v2925, %v2924
      %v3127 = vpack.c.b16 %v2927, %v2926
      %v3128 = vpack.c.b16 %v2928, %v2928
      %v3129 = vpack.c.b16 %v2930, %v2929
      %v3130 = vpack.c.b16 %v2932, %v2931
      %v3131 = vpack.c.b16 %v2934, %v2933
      %v3132 = vpack.c.b16 %v2935, %v2935
      %v3133 = vpack.c.b16 %v2937, %v2936
      %v3134 = vpack.c.b16 %v2939, %v2938
      %v3135 = vpack.c.b16 %v2941, %v2940
      %v3136 = vpack.c.b16 %v2942, %v2942
      %v3137 = vpack.c.b16 %v2944, %v2943
      %v3138 = vpack.c.b16 %v2946, %v2945
      %v3139 = vpack.c.b16 %v2948, %v2947
      %v3140 = vpack.c.b16 %v2949, %v2949
      %v3141 = vpack.c.b16 %v2951, %v2950
      %v3142 = vpack.c.b16 %v2953, %v2952
      %v3143 = vpack.c.b16 %v2955, %v2954
      %v3144 = vpack.c.b16 %v2956, %v2956
      %v3145 = vpack.c.b16 %v2958, %v2957
      %v3146 = vpack.c.b16 %v2960, %v2959
      %v3147 = vpack.c.b16 %v2962, %v2961
      %v3148 = vpack.c.b16 %v2963, %v2963
      %v3149 = vpack.c.b16 %v2965, %v2964
      %v3150 = vpack.c.b16 %v2967, %v2966
      %v3151 = vpack.c.b16 %v2969, %v2968
      %v3152 = vpack.c.b16 %v2970, %v2970
      %v3153 = vpack.c.b16 %v2972, %v2971
      %v3154 = vpack.c.b16 %v2974, %v2973
      %v3155 = vpack.c.b16 %v2976, %v2975
      %v3156 = vpack.c.b16 %v2977, %v2977
      %v3157 = vpack.c.b16 %v2979, %v2978
      %v3158 = vpack.c.b16 %v2981, %v2980
      %v3159 = vpack.c.b16 %v2983, %v2982
      %v3160 = vpack.c.b16 %v2984, %v2984
      %v3161 = vpack.c.b16 %v2986, %v2985
      %v3162 = vpack.c.b16 %v2988, %v2987
      %v3163 = vpack.c.b16 %v2990, %v2989
      %v3164 = vpack.c.b16 %v2991, %v2991
      %v3165 = vpack.c.b16 %v2993, %v2992
      %v3166 = vpack.c.b16 %v2995, %v2994
      %v3167 = vpack.c.b16 %v2997, %v2996
      %v3168 = vpack.c.b16 %v2998, %v2998
      %v3169 = vpack.c.b16 %v3000, %v2999
      %v3170 = vpack.c.b16 %v3002, %v3001
      %v3171 = vpack.c.b16 %v3004, %v3003
      %v3172 = vpack.c.b16 %v3005, %v3005
      %v3173 = vpack.c.b16 %v3007, %v3006
      %v3174 = vpack.c.b16 %v3009, %v3008
      %v3175 = vpack.c.b16 %v3011, %v3010
      %v3176 = vpack.c.b16 %v3012, %v3012
      %v3177 = vpack.c.b16 %v3014, %v3013
      %v3178 = vpack.c.b16 %v3016, %v3015
      %v3179 = vpack.c.b16 %v3018, %v3017
      %v3180 = vpack.c.b16 %v3019, %v3019
      %v3181 = vpack.c.b16 %v3021, %v3020
      %v3182 = vpack.c.b16 %v3023, %v3022
      %v3183 = vpack.c.b16 %v3025, %v3024
      %v3184 = vpack.c.b16 %v3026, %v3026
      %v3185 = vpack.c.b16 %v3028, %v3027
      %v3186 = vpack.c.b16 %v3030, %v3029
      %v3187 = vpack.c.b16 %v3032, %v3031
      %v3188 = vpack.c.b16 %v3033, %v3033
      %v3189 = vpack.c.b16 %v3035, %v3034
      %v3190 = vpack.c.b16 %v3037, %v3036
      %v3191 = vpack.c.b16 %v3039, %v3038
      %v3192 = vpack.c.b16 %v3040, %v3040
      %v3193 = vpack.c.b16 %v3042, %v3041
      %v3194 = vpack.c.b16 %v3044, %v3043
      %v3195 = vpack.c.b16 %v3046, %v3045
      %v3196 = vpack.c.b16 %v3047, %v3047
      %v3197 = vpack.c.b16 %v3049, %v3048
      %v3198 = vpack.c.b16 %v3051, %v3050
      %v3199 = vpack.c.b16 %v3053, %v3052
      %v3200 = vpack.c.b16 %v3054, %v3054
      %v3201 = vpack.c.b16 %v3056, %v3055
      %v3202 = vpack.c.b16 %v3058, %v3057
      %v3203 = vpack.c.b16 %v3060, %v3059
      %v3204 = vpack.c.b16 %v3061, %v3061
      %v3205 = vpack.c.b16 %v3063, %v3062
      %v3206 = vpack.c.b16 %v3065, %v3064
      %v3207 = vpack.c.b16 %v3067, %v3066
      %v3208 = vpack.c.b16 %v3068, %v3068
      %v3209 = vpack.c.b16 %v3070, %v3069
      %v3210 = vpack.c.b16 %v3072, %v3071
      %v3211 = vpack.c.b16 %v3074, %v3073
      %v3212 = vpack.c.b16 %v3075, %v3075
      %v3213 = vpack.c.b16 %v3077, %v3076
      %v3214 = vpack.c.b16 %v3079, %v3078
      %v3215 = vpack.c.b16 %v3081, %v3080
      %v3216 = vpack.c.b16 %v3082, %v3082
      %v3217 = vpack.c.b16 %v3084, %v3083
      %v3218 = vpack.c.b16 %v3086, %v3085
      %v3219 = vpack.c.b16 %v3088, %v3087
      %v3220 = vpack.c.b16 %v3089, %v3089
      %v3221 = vpack.c.b16 %v3091, %v3090
      %v3222 = vpack.c.b16 %v3093, %v3092
      %v3223 = vpack.c.b16 %v3095, %v3094
      %v3224 = vpack.c.b16 %v3096, %v3096
      %3353 = vst [vmem:[%s228] sm:$0xff] %v3097
      %3354 = vst [vmem:[%s228 + $0x8] sm:$0xff] %v3098
      %3355 = vst [vmem:[%s228 + $0x10] sm:$0xff] %v3099
      %vm3356 = vcmask 125952
      %3357 = vst.msk [vmem:[%s228 + $0x18] sm:$0xf] %vm3356, %v3100
      %3358 = vst [vmem:[%s228 + $0x1c] sm:$0xff] %v3101
      %3359 = vst [vmem:[%s228 + $0x24] sm:$0xff] %v3102
      %3360 = vst [vmem:[%s228 + $0x2c] sm:$0xff] %v3103
      %3361 = vst.msk [vmem:[%s228 + $0x34] sm:$0xf] %vm3356, %v3104
      %3362 = vst [vmem:[%s228 + $0x38] sm:$0xff] %v3105
      %3363 = vst [vmem:[%s228 + $0x40] sm:$0xff] %v3106
      %3364 = vst [vmem:[%s228 + $0x48] sm:$0xff] %v3107
      %3365 = vst.msk [vmem:[%s228 + $0x50] sm:$0xf] %vm3356, %v3108
      %3366 = vst [vmem:[%s228 + $0x54] sm:$0xff] %v3109
      %3367 = vst [vmem:[%s228 + $0x5c] sm:$0xff] %v3110
      %3368 = vst [vmem:[%s228 + $0x64] sm:$0xff] %v3111
      %3369 = vst.msk [vmem:[%s228 + $0x6c] sm:$0xf] %vm3356, %v3112
      %3370 = vst [vmem:[%s228 + $0x70] sm:$0xff] %v3113
      %3371 = vst [vmem:[%s228 + $0x78] sm:$0xff] %v3114
      %3372 = vst [vmem:[%s228 + $0x80] sm:$0xff] %v3115
      %3373 = vst.msk [vmem:[%s228 + $0x88] sm:$0xf] %vm3356, %v3116
      %3374 = vst [vmem:[%s228 + $0x8c] sm:$0xff] %v3117
      %3375 = vst [vmem:[%s228 + $0x94] sm:$0xff] %v3118
      %3376 = vst [vmem:[%s228 + $0x9c] sm:$0xff] %v3119
      %3377 = vst.msk [vmem:[%s228 + $0xa4] sm:$0xf] %vm3356, %v3120
      %3378 = vst [vmem:[%s228 + $0xa8] sm:$0xff] %v3121
      %3379 = vst [vmem:[%s228 + $0xb0] sm:$0xff] %v3122
      %3380 = vst [vmem:[%s228 + $0xb8] sm:$0xff] %v3123
      %3381 = vst.msk [vmem:[%s228 + $0xc0] sm:$0xf] %vm3356, %v3124
      %3382 = vst [vmem:[%s228 + $0xc4] sm:$0xff] %v3125
      %3383 = vst [vmem:[%s228 + $0xcc] sm:$0xff] %v3126
      %3384 = vst [vmem:[%s228 + $0xd4] sm:$0xff] %v3127
      %3385 = vst.msk [vmem:[%s228 + $0xdc] sm:$0xf] %vm3356, %v3128
      %3386 = vst [vmem:[%s228 + $0xe0] sm:$0xff] %v3129
      %3387 = vst [vmem:[%s228 + $0xe8] sm:$0xff] %v3130
      %3388 = vst [vmem:[%s228 + $0xf0] sm:$0xff] %v3131
      %3389 = vst.msk [vmem:[%s228 + $0xf8] sm:$0xf] %vm3356, %v3132
      %3390 = vst [vmem:[%s228 + $0xfc] sm:$0xff] %v3133
      %3391 = vst [vmem:[%s228 + $0x104] sm:$0xff] %v3134
      %3392 = vst [vmem:[%s228 + $0x10c] sm:$0xff] %v3135
      %3393 = vst.msk [vmem:[%s228 + $0x114] sm:$0xf] %vm3356, %v3136
      %3394 = vst [vmem:[%s228 + $0x118] sm:$0xff] %v3137
      %3395 = vst [vmem:[%s228 + $0x120] sm:$0xff] %v3138
      %3396 = vst [vmem:[%s228 + $0x128] sm:$0xff] %v3139
      %3397 = vst.msk [vmem:[%s228 + $0x130] sm:$0xf] %vm3356, %v3140
      %3398 = vst [vmem:[%s228 + $0x134] sm:$0xff] %v3141
      %3399 = vst [vmem:[%s228 + $0x13c] sm:$0xff] %v3142
      %3400 = vst [vmem:[%s228 + $0x144] sm:$0xff] %v3143
      %3401 = vst.msk [vmem:[%s228 + $0x14c] sm:$0xf] %vm3356, %v3144
      %3402 = vst [vmem:[%s228 + $0x150] sm:$0xff] %v3145
      %3403 = vst [vmem:[%s228 + $0x158] sm:$0xff] %v3146
      %3404 = vst [vmem:[%s228 + $0x160] sm:$0xff] %v3147
      %3405 = vst.msk [vmem:[%s228 + $0x168] sm:$0xf] %vm3356, %v3148
      %3406 = vst [vmem:[%s228 + $0x16c] sm:$0xff] %v3149
      %3407 = vst [vmem:[%s228 + $0x174] sm:$0xff] %v3150
      %3408 = vst [vmem:[%s228 + $0x17c] sm:$0xff] %v3151
      %3409 = vst.msk [vmem:[%s228 + $0x184] sm:$0xf] %vm3356, %v3152
      %3410 = vst [vmem:[%s228 + $0x188] sm:$0xff] %v3153
      %3411 = vst [vmem:[%s228 + $0x190] sm:$0xff] %v3154
      %3412 = vst [vmem:[%s228 + $0x198] sm:$0xff] %v3155
      %3413 = vst.msk [vmem:[%s228 + $0x1a0] sm:$0xf] %vm3356, %v3156
      %3414 = vst [vmem:[%s228 + $0x1a4] sm:$0xff] %v3157
      %3415 = vst [vmem:[%s228 + $0x1ac] sm:$0xff] %v3158
      %3416 = vst [vmem:[%s228 + $0x1b4] sm:$0xff] %v3159
      %3417 = vst.msk [vmem:[%s228 + $0x1bc] sm:$0xf] %vm3356, %v3160
      %3418 = vst [vmem:[%s228 + $0x1c0] sm:$0xff] %v3161
      %3419 = vst [vmem:[%s228 + $0x1c8] sm:$0xff] %v3162
      %3420 = vst [vmem:[%s228 + $0x1d0] sm:$0xff] %v3163
      %3421 = vst.msk [vmem:[%s228 + $0x1d8] sm:$0xf] %vm3356, %v3164
      %3422 = vst [vmem:[%s228 + $0x1dc] sm:$0xff] %v3165
      %3423 = vst [vmem:[%s228 + $0x1e4] sm:$0xff] %v3166
      %3424 = vst [vmem:[%s228 + $0x1ec] sm:$0xff] %v3167
      %3425 = vst.msk [vmem:[%s228 + $0x1f4] sm:$0xf] %vm3356, %v3168
      %3426 = vst [vmem:[%s228 + $0x1f8] sm:$0xff] %v3169
      %3427 = vst [vmem:[%s228 + $0x200] sm:$0xff] %v3170
      %3428 = vst [vmem:[%s228 + $0x208] sm:$0xff] %v3171
      %3429 = vst.msk [vmem:[%s228 + $0x210] sm:$0xf] %vm3356, %v3172
      %3430 = vst [vmem:[%s228 + $0x214] sm:$0xff] %v3173
      %3431 = vst [vmem:[%s228 + $0x21c] sm:$0xff] %v3174
      %3432 = vst [vmem:[%s228 + $0x224] sm:$0xff] %v3175
      %3433 = vst.msk [vmem:[%s228 + $0x22c] sm:$0xf] %vm3356, %v3176
      %3434 = vst [vmem:[%s228 + $0x230] sm:$0xff] %v3177
      %3435 = vst [vmem:[%s228 + $0x238] sm:$0xff] %v3178
      %3436 = vst [vmem:[%s228 + $0x240] sm:$0xff] %v3179
      %3437 = vst.msk [vmem:[%s228 + $0x248] sm:$0xf] %vm3356, %v3180
      %3438 = vst [vmem:[%s228 + $0x24c] sm:$0xff] %v3181
      %3439 = vst [vmem:[%s228 + $0x254] sm:$0xff] %v3182
      %3440 = vst [vmem:[%s228 + $0x25c] sm:$0xff] %v3183
      %3441 = vst.msk [vmem:[%s228 + $0x264] sm:$0xf] %vm3356, %v3184
      %3442 = vst [vmem:[%s228 + $0x268] sm:$0xff] %v3185
      %3443 = vst [vmem:[%s228 + $0x270] sm:$0xff] %v3186
      %3444 = vst [vmem:[%s228 + $0x278] sm:$0xff] %v3187
      %3445 = vst.msk [vmem:[%s228 + $0x280] sm:$0xf] %vm3356, %v3188
      %3446 = vst [vmem:[%s228 + $0x284] sm:$0xff] %v3189
      %3447 = vst [vmem:[%s228 + $0x28c] sm:$0xff] %v3190
      %3448 = vst [vmem:[%s228 + $0x294] sm:$0xff] %v3191
      %3449 = vst.msk [vmem:[%s228 + $0x29c] sm:$0xf] %vm3356, %v3192
      %3450 = vst [vmem:[%s228 + $0x2a0] sm:$0xff] %v3193
      %3451 = vst [vmem:[%s228 + $0x2a8] sm:$0xff] %v3194
      %3452 = vst [vmem:[%s228 + $0x2b0] sm:$0xff] %v3195
      %3453 = vst.msk [vmem:[%s228 + $0x2b8] sm:$0xf] %vm3356, %v3196
      %3454 = vst [vmem:[%s228 + $0x2bc] sm:$0xff] %v3197
      %3455 = vst [vmem:[%s228 + $0x2c4] sm:$0xff] %v3198
      %3456 = vst [vmem:[%s228 + $0x2cc] sm:$0xff] %v3199
      %3457 = vst.msk [vmem:[%s228 + $0x2d4] sm:$0xf] %vm3356, %v3200
      %3458 = vst [vmem:[%s228 + $0x2d8] sm:$0xff] %v3201
      %3459 = vst [vmem:[%s228 + $0x2e0] sm:$0xff] %v3202
      %3460 = vst [vmem:[%s228 + $0x2e8] sm:$0xff] %v3203
      %3461 = vst.msk [vmem:[%s228 + $0x2f0] sm:$0xf] %vm3356, %v3204
      %3462 = vst [vmem:[%s228 + $0x2f4] sm:$0xff] %v3205
      %3463 = vst [vmem:[%s228 + $0x2fc] sm:$0xff] %v3206
      %3464 = vst [vmem:[%s228 + $0x304] sm:$0xff] %v3207
      %3465 = vst.msk [vmem:[%s228 + $0x30c] sm:$0xf] %vm3356, %v3208
      %3466 = vst [vmem:[%s228 + $0x310] sm:$0xff] %v3209
      %3467 = vst [vmem:[%s228 + $0x318] sm:$0xff] %v3210
      %3468 = vst [vmem:[%s228 + $0x320] sm:$0xff] %v3211
      %3469 = vst.msk [vmem:[%s228 + $0x328] sm:$0xf] %vm3356, %v3212
      %3470 = vst [vmem:[%s228 + $0x32c] sm:$0xff] %v3213
      %3471 = vst [vmem:[%s228 + $0x334] sm:$0xff] %v3214
      %3472 = vst [vmem:[%s228 + $0x33c] sm:$0xff] %v3215
      %3473 = vst.msk [vmem:[%s228 + $0x344] sm:$0xf] %vm3356, %v3216
      %3474 = vst [vmem:[%s228 + $0x348] sm:$0xff] %v3217
      %3475 = vst [vmem:[%s228 + $0x350] sm:$0xff] %v3218
      %3476 = vst [vmem:[%s228 + $0x358] sm:$0xff] %v3219
      %3477 = vst.msk [vmem:[%s228 + $0x360] sm:$0xf] %vm3356, %v3220
      %3478 = vst [vmem:[%s228 + $0x364] sm:$0xff] %v3221
      %3479 = vst [vmem:[%s228 + $0x36c] sm:$0xff] %v3222
      %3480 = vst [vmem:[%s228 + $0x374] sm:$0xff] %v3223
      %3481 = vst.msk [vmem:[%s228 + $0x37c] sm:$0xf] %vm3356, %v3224
      %s3482 = smul.u32 32, %s16
      %p3483 = scmp.lt.s32.totalorder %s3482, 63
      %s3484 = scalar_select %p3483, %s3482, 63
      %s3485 = smul.addr %s3484, 7
      %s3486 = smul.addr %s3485, 4
      %s3487 = scalar_lea.vmem %s5, %s3486
      // Predicated region
      $region41: #{tpu_custom_call.1} parent=39 // pred_check
        %p3488 = pneg %p144
      $region42: #{tpu_custom_call.1} parent=39 // pred_check_branch
        %3490 = sbr.rel (%p3488) target = $region44
      $region43: #{tpu_custom_call.1} parent=39 // pred_region
        %s3491 = smul.u32 32, %s16
      $region44: #{tpu_custom_call.1} parent=39 // pred_fallthru
        _
    $region40: #{tpu_custom_call.1} parent=5 // pred_fallthru
      _
    %p3492 = scmp.le.s32.totalorder 2, %s11
    // Predicated region
    $region45: #{tpu_custom_call.1} parent=5 // pred_check
      %p3493 = pneg %p3492
    $region46: #{tpu_custom_call.1} parent=5 // pred_check_branch
      %3495 = sbr.rel (%p3493) target = $region48
    $region47: #{tpu_custom_call.1} parent=5 // pred_region
      %s3496 = ssub.s32 %s11, 2
      // Predicated region
      $region49: #{tpu_custom_call.1} parent=47 // pred_check
        %p3497 = pneg %p150
      $region50: #{tpu_custom_call.1} parent=47 // pred_check_branch
        %3499 = sbr.rel (%p3497) target = $region52
      $region51: #{tpu_custom_call.1} parent=47 // pred_region
        %s3500 = smul.u32 32, %s17
        %p3501 = scmp.lt.s32.totalorder %s3500, 63
        %s3502 = scalar_select %p3501, %s3500, 63
        %s3503 = smul.addr %s3502, 7
        %s3504 = smul.addr %s3503, 4
        %s3505 = scalar_lea.vmem %s5, %s3504
      $region52: #{tpu_custom_call.1} parent=47 // pred_fallthru
        _
    $region48: #{tpu_custom_call.1} parent=5 // pred_fallthru
      _
  $region6: #{tpu_custom_call.1} parent=0 // loop_footer
    %s15 = sadd.s32 1, %s11
  $region7: #{tpu_custom_call.1} parent=0 // loop_footer_branch
    %10 = sbr.rel target = $region3
  $region8: #{tpu_custom_call.1} parent=0 // loop_exit
    _

</llo_original>
